<compile_context>
chip_gen: v6e
topology: v6e:2x2x1
jax: 0.10.0
libtpu: 0.0.40
codegen_flags: <defaults>
</compile_context>

<pallas_src>
import functools

import jax
import jax.numpy as jnp
import numpy as np
from jax.experimental import pallas as pl
from jax.experimental.pallas import tpu as pltpu


def _layernorm(x, g, b, eps=1e-5):
    mu = jnp.mean(x, axis=-1, keepdims=True)
    xc = x - mu
    var = jnp.mean(xc * xc, axis=-1, keepdims=True)
    return xc * jax.lax.rsqrt(var + eps) * g + b


def _block_kernel(x_ref, wqkv_ref, wp_ref, w1_ref, w2_ref, vec_ref, o_ref,
                  *, n_head, head_size):
    x = x_ref[...]                       # (T, C)  one batch element per grid step
    T, C = x.shape
    H, hs = n_head, head_size

    vecs = vec_ref[...]                  # (8, 4C) packed parameter vectors (one DMA)
    ln1_g = vecs[0:1, :C]
    ln1_b = vecs[1:2, :C]
    ln2_g = vecs[2:3, :C]
    ln2_b = vecs[3:4, :C]
    bp = vecs[4:5, :C]
    b2 = vecs[5:6, :C]
    b1 = vecs[6:7, :]                    # (1, 4C)

    # ---------------- multi-head causal self-attention on LN1(x) ----------------
    h = _layernorm(x, ln1_g, ln1_b)
    qkv = jnp.dot(h, wqkv_ref[...], preferred_element_type=jnp.float32)   # (T, 3C)

    # Reference scales scores by n_embd**-0.5 (not head_size); one VPU mul, free.
    q = qkv[:, :C] * (C ** -0.5)
    k = qkv[:, C:2 * C]
    v = qkv[:, 2 * C:3 * C]

    # Head-batched layout (H, T, hs): one batched MXU pass instead of per-head slices.
    qh = jnp.transpose(q.reshape(T, H, hs), (1, 0, 2))
    kh = jnp.transpose(k.reshape(T, H, hs), (1, 0, 2))
    vh = jnp.transpose(v.reshape(T, H, hs), (1, 0, 2))

    s = jnp.einsum('hqd,hkd->hqk', qh, kh,
                   preferred_element_type=jnp.float32)                    # (H, T, T)

    # Causal mask generated in-kernel (no (T,T) HBM input).
    row = jax.lax.broadcasted_iota(jnp.int32, (T, T), 0)
    col = jax.lax.broadcasted_iota(jnp.int32, (T, T), 1)
    s = jnp.where((col <= row)[None, :, :], s, jnp.float32(-1e9))

    s = s - jnp.max(s, axis=-1, keepdims=True)
    p = jnp.exp(s)
    denom = jnp.sum(p, axis=-1, keepdims=True)                            # (H, T, 1)
    o = jnp.einsum('hqk,hkd->hqd', p, vh,
                   preferred_element_type=jnp.float32)                    # (H, T, hs)
    o = o * pl.reciprocal(denom, approx=True)                             # EUP slot

    # Heads back onto lanes, then ONE full-C output projection.
    o = jnp.transpose(o, (1, 0, 2)).reshape(T, C)
    sa = jnp.dot(o, wp_ref[...], preferred_element_type=jnp.float32) + bp
    x1 = x + sa

    # ------------------------- feed-forward on LN2(x1) --------------------------
    h2 = _layernorm(x1, ln2_g, ln2_b)
    ff = jnp.dot(h2, w1_ref[...], preferred_element_type=jnp.float32) + b1
    ff = jnp.maximum(ff, 0.0)
    ff = jnp.dot(ff, w2_ref[...], preferred_element_type=jnp.float32) + b2

    o_ref[...] = (x1 + ff).astype(o_ref.dtype)


def prepare_params(p, n_embd):
    """One-time parameter prep (hoisted off the per-call path): fuse QKV weights and
    pack all (1, .) vectors into a single (8, 4C) slab (one DMA instead of seven)."""
    C = n_embd
    wqkv = jnp.concatenate([p["wq"], p["wk"], p["wv"]], axis=1)           # (C, 3C)
    vecs = jnp.zeros((8, 4 * C), jnp.float32)
    vecs = vecs.at[0, :C].set(p["ln1_g"].reshape(C))
    vecs = vecs.at[1, :C].set(p["ln1_b"].reshape(C))
    vecs = vecs.at[2, :C].set(p["ln2_g"].reshape(C))
    vecs = vecs.at[3, :C].set(p["ln2_b"].reshape(C))
    vecs = vecs.at[4, :C].set(p["bp"].reshape(C))
    vecs = vecs.at[5, :C].set(p["b2"].reshape(C))
    vecs = vecs.at[6, :].set(p["b1"].reshape(4 * C))
    return {"wqkv": wqkv, "wp": p["wp"], "w1": p["w1"], "w2": p["w2"], "vecs": vecs}


@functools.partial(jax.jit, static_argnames=("n_head", "head_size"))
def transformer_block(x, wqkv, wp, w1, w2, vecs, *, n_head, head_size):
    B, T, C = x.shape

    def weight_spec(a):
        nd = a.ndim
        return pl.BlockSpec(a.shape, lambda b, _nd=nd: (0,) * _nd)   # grid-invariant

    kernel = functools.partial(_block_kernel, n_head=n_head, head_size=head_size)
    return pl.pallas_call(
        kernel,
        out_shape=jax.ShapeDtypeStruct((B, T, C), x.dtype),
        grid=(B,),
        in_specs=[pl.BlockSpec((None, T, C), lambda b: (b, 0, 0)),
                  weight_spec(wqkv), weight_spec(wp),
                  weight_spec(w1), weight_spec(w2), weight_spec(vecs)],
        out_specs=pl.BlockSpec((None, T, C), lambda b: (b, 0, 0)),
        compiler_params=pltpu.CompilerParams(dimension_semantics=("parallel",)),
    )(x, wqkv, wp, w1, w2, vecs)


def ref_block(x, p, n_head, head_size):
    """Pure-JAX reference matching the PyTorch module (eval mode)."""
    def ln(z, g, b):
        mu = z.mean(-1, keepdims=True)
        var = ((z - mu) ** 2).mean(-1, keepdims=True)
        return (z - mu) / jnp.sqrt(var + 1e-5) * g + b

    B, T, C = x.shape
    h = ln(x, p["ln1_g"], p["ln1_b"])
    q = h @ p["wq"]
    k = h @ p["wk"]
    v = h @ p["wv"]
    qh = q.reshape(B, T, n_head, head_size).transpose(0, 2, 1, 3)
    kh = k.reshape(B, T, n_head, head_size).transpose(0, 2, 1, 3)
    vh = v.reshape(B, T, n_head, head_size).transpose(0, 2, 1, 3)
    wei = jnp.einsum("bhtd,bhsd->bhts", qh, kh) * (C ** -0.5)
    m = jnp.tril(jnp.ones((T, T), bool))
    wei = jnp.where(m, wei, -jnp.inf)
    wei = jax.nn.softmax(wei, axis=-1)
    out = jnp.einsum("bhts,bhsd->bhtd", wei, vh).transpose(0, 2, 1, 3).reshape(B, T, C)
    sa = out @ p["wp"] + p["bp"]
    x1 = x + sa
    h2 = ln(x1, p["ln2_g"], p["ln2_b"])
    ff = jnp.maximum(h2 @ p["w1"] + p["b1"], 0.0) @ p["w2"] + p["b2"]
    return x1 + ff


if __name__ == "__main__":
    # config: n_embd=32, n_head=4, block_size=8, bias=False, dropout=0.0
    B, T, C, H = 2, 8, 32, 4
    hs = C // H

    key = jax.random.PRNGKey(0)
    kx, kq, kk, kv, kp, k1, k2, kg1, kg2, kb1, kb2 = jax.random.split(key, 11)
    s = 0.1
    params = {
        "ln1_g": 1.0 + s * jax.random.normal(kg1, (C,), jnp.float32),
        "ln1_b": s * jax.random.normal(kb1, (C,), jnp.float32),
        "wq": s * jax.random.normal(kq, (C, C), jnp.float32),
        "wk": s * jax.random.normal(kk, (C, C), jnp.float32),
        "wv": s * jax.random.normal(kv, (C, C), jnp.float32),
        "wp": s * jax.random.normal(kp, (C, C), jnp.float32),
        "bp": jnp.zeros((C,), jnp.float32),
        "ln2_g": 1.0 + s * jax.random.normal(kg2, (C,), jnp.float32),
        "ln2_b": s * jax.random.normal(kb2, (C,), jnp.float32),
        "w1": s * jax.random.normal(k1, (C, 4 * C), jnp.float32),
        "b1": jnp.zeros((4 * C,), jnp.float32),
        "w2": s * jax.random.normal(k2, (4 * C, C), jnp.float32),
        "b2": jnp.zeros((C,), jnp.float32),
    }

    x = jax.random.normal(kx, (B, T, C), jnp.float32)

    prepped = prepare_params(params, C)          # one-time, off the per-call path
    out = transformer_block(x, prepped["wqkv"], prepped["wp"], prepped["w1"],
                            prepped["w2"], prepped["vecs"],
                            n_head=H, head_size=hs)
    out = jax.block_until_ready(out)

    ref = jax.block_until_ready(ref_block(x, params, H, hs))
    # Tolerance accounts for the EUP approximate reciprocal in the softmax
    # normalization; structural errors would be orders of magnitude larger.
    np.testing.assert_allclose(np.asarray(out), np.asarray(ref), atol=5e-3, rtol=5e-3)

    print("KERNEL_OK")
</pallas_src>

<mosaic_0001>
module attributes {stable_mosaic.version = 11 : i64} {
  func.func @_block_kernel(%arg0: i32, %arg1: memref<1x8x32xf32, #tpu.memory_space<vmem>>, %arg2: memref<32x96xf32, #tpu.memory_space<vmem>>, %arg3: memref<32x32xf32, #tpu.memory_space<vmem>>, %arg4: memref<32x128xf32, #tpu.memory_space<vmem>>, %arg5: memref<128x32xf32, #tpu.memory_space<vmem>>, %arg6: memref<8x128xf32, #tpu.memory_space<vmem>>, %arg7: memref<1x8x32xf32, #tpu.memory_space<vmem>>) attributes {dimension_semantics = [#tpu.dimension_semantics<parallel>], iteration_bounds = array<i64: 2>, scalar_prefetch = 0 : i64, scratch_operands = 0 : i64, tpu.core_type = #tpu.core_type<tc>, window_params = [{transform_indices = @transform_0, window_bounds = array<i64: 1, 8, 32>}, {pipeline_mode = #tpu.pipeline_mode<synchronous>, transform_indices = @transform_1, window_bounds = array<i64: 32, 96>}, {pipeline_mode = #tpu.pipeline_mode<synchronous>, transform_indices = @transform_2, window_bounds = array<i64: 32, 32>}, {pipeline_mode = #tpu.pipeline_mode<synchronous>, transform_indices = @transform_3, window_bounds = array<i64: 32, 128>}, {pipeline_mode = #tpu.pipeline_mode<synchronous>, transform_indices = @transform_4, window_bounds = array<i64: 128, 32>}, {pipeline_mode = #tpu.pipeline_mode<synchronous>, transform_indices = @transform_5, window_bounds = array<i64: 8, 128>}, {transform_indices = @transform_6, window_bounds = array<i64: 1, 8, 32>}]} {
    %c0 = arith.constant 0 : index
    %c0_0 = arith.constant 0 : index
    %c0_1 = arith.constant 0 : index
    %0 = vector.load %arg1[%c0, %c0_0, %c0_1] : memref<1x8x32xf32, #tpu.memory_space<vmem>>, vector<1x8x32xf32>
    %1 = vector.shape_cast %0 : vector<1x8x32xf32> to vector<8x32xf32>
    %c0_2 = arith.constant 0 : index
    %c0_3 = arith.constant 0 : index
    %2 = vector.load %arg6[%c0_2, %c0_3] : memref<8x128xf32, #tpu.memory_space<vmem>>, vector<8x128xf32>
    %3 = vector.extract_strided_slice %2 {offsets = [0, 0], sizes = [1, 32], strides = [1, 1]} : vector<8x128xf32> to vector<1x32xf32>
    %4 = vector.extract_strided_slice %2 {offsets = [1, 0], sizes = [1, 32], strides = [1, 1]} : vector<8x128xf32> to vector<1x32xf32>
    %5 = vector.extract_strided_slice %2 {offsets = [2, 0], sizes = [1, 32], strides = [1, 1]} : vector<8x128xf32> to vector<1x32xf32>
    %6 = vector.extract_strided_slice %2 {offsets = [3, 0], sizes = [1, 32], strides = [1, 1]} : vector<8x128xf32> to vector<1x32xf32>
    %7 = vector.extract_strided_slice %2 {offsets = [4, 0], sizes = [1, 32], strides = [1, 1]} : vector<8x128xf32> to vector<1x32xf32>
    %8 = vector.extract_strided_slice %2 {offsets = [5, 0], sizes = [1, 32], strides = [1, 1]} : vector<8x128xf32> to vector<1x32xf32>
    %9 = vector.extract_strided_slice %2 {offsets = [6, 0], sizes = [1, 128], strides = [1, 1]} : vector<8x128xf32> to vector<1x128xf32>
    %cst = arith.constant dense<0.000000e+00> : vector<8xf32>
    %10 = vector.multi_reduction <add>, %1, %cst [1] : vector<8x32xf32> to vector<8xf32>
    %11 = vector.shape_cast %10 : vector<8xf32> to vector<8x1xf32>
    %cst_4 = arith.constant 3.200000e+01 : f32
    %12 = vector.broadcast %cst_4 : f32 to vector<8x1xf32>
    %13 = arith.divf %11, %12 : vector<8x1xf32>
    %14 = vector.broadcast %13 : vector<8x1xf32> to vector<8x32xf32>
    %15 = arith.subf %1, %14 : vector<8x32xf32>
    %16 = arith.mulf %15, %15 : vector<8x32xf32>
    %cst_5 = arith.constant dense<0.000000e+00> : vector<8xf32>
    %17 = vector.multi_reduction <add>, %16, %cst_5 [1] : vector<8x32xf32> to vector<8xf32>
    %18 = vector.shape_cast %17 : vector<8xf32> to vector<8x1xf32>
    %cst_6 = arith.constant 3.200000e+01 : f32
    %19 = vector.broadcast %cst_6 : f32 to vector<8x1xf32>
    %20 = arith.divf %18, %19 : vector<8x1xf32>
    %cst_7 = arith.constant 9.99999974E-6 : f32
    %21 = vector.broadcast %cst_7 : f32 to vector<8x1xf32>
    %22 = arith.addf %20, %21 : vector<8x1xf32>
    %23 = math.rsqrt %22 : vector<8x1xf32>
    %24 = vector.broadcast %23 : vector<8x1xf32> to vector<8x32xf32>
    %25 = arith.mulf %15, %24 : vector<8x32xf32>
    %26 = vector.broadcast %3 : vector<1x32xf32> to vector<8x32xf32>
    %27 = arith.mulf %25, %26 : vector<8x32xf32>
    %28 = vector.broadcast %4 : vector<1x32xf32> to vector<8x32xf32>
    %29 = arith.addf %27, %28 : vector<8x32xf32>
    %c0_8 = arith.constant 0 : index
    %c0_9 = arith.constant 0 : index
    %30 = vector.load %arg2[%c0_8, %c0_9] : memref<32x96xf32, #tpu.memory_space<vmem>>, vector<32x96xf32>
    %cst_10 = arith.constant dense<0.000000e+00> : vector<8x96xf32>
    %31 = tpu.matmul %29, %30, %cst_10 {dimension_numbers = #tpu.dot_dimension_numbers<[1], [0], [0], [1], [0, 0, 1, 1], [], []>} : vector<8x32xf32>, vector<32x96xf32>, vector<8x96xf32> -> vector<8x96xf32>
    %32 = vector.extract_strided_slice %31 {offsets = [0, 0], sizes = [8, 32], strides = [1, 1]} : vector<8x96xf32> to vector<8x32xf32>
    %cst_11 = arith.constant 0.176776692 : f32
    %33 = vector.broadcast %cst_11 : f32 to vector<8x32xf32>
    %34 = arith.mulf %32, %33 : vector<8x32xf32>
    %35 = vector.extract_strided_slice %31 {offsets = [0, 32], sizes = [8, 32], strides = [1, 1]} : vector<8x96xf32> to vector<8x32xf32>
    %36 = vector.extract_strided_slice %31 {offsets = [0, 64], sizes = [8, 32], strides = [1, 1]} : vector<8x96xf32> to vector<8x32xf32>
    %37 = vector.shape_cast %34 : vector<8x32xf32> to vector<8x4x8xf32>
    %38 = tpu.transpose %37, [1, 0, 2] : vector<8x4x8xf32> -> vector<4x8x8xf32>
    %39 = vector.shape_cast %35 : vector<8x32xf32> to vector<8x4x8xf32>
    %40 = tpu.transpose %39, [1, 0, 2] : vector<8x4x8xf32> -> vector<4x8x8xf32>
    %41 = vector.shape_cast %36 : vector<8x32xf32> to vector<8x4x8xf32>
    %42 = tpu.transpose %41, [1, 0, 2] : vector<8x4x8xf32> -> vector<4x8x8xf32>
    "tpu.trace_start"() <{level = 10 : i32, message = "hqd,hkd->hqk"}> : () -> ()
    %cst_12 = arith.constant dense<0.000000e+00> : vector<4x8x8xf32>
    %43 = tpu.matmul %38, %40, %cst_12 {dimension_numbers = #tpu.dot_dimension_numbers<[2], [2], [1], [1], [0, 0, 0, 1, 1, 1], [0], [0]>} : vector<4x8x8xf32>, vector<4x8x8xf32>, vector<4x8x8xf32> -> vector<4x8x8xf32>
    "tpu.trace_stop"() : () -> ()
    %44 = tpu.iota {dimensions = array<i32: 0>} : vector<8x8xi32>
    %45 = tpu.iota {dimensions = array<i32: 1>} : vector<8x8xi32>
    %46 = arith.cmpi sle, %45, %44 : vector<8x8xi32>
    %47 = vector.shape_cast %46 : vector<8x8xi1> to vector<1x8x8xi1>
    %cst_13 = arith.constant -1.000000e+09 : f32
    %48 = vector.shape_cast %47 : vector<1x8x8xi1> to vector<1x8x8xi1>
    %49 = vector.broadcast %48 : vector<1x8x8xi1> to vector<4x8x8xi1>
    %50 = vector.broadcast %cst_13 : f32 to vector<4x8x8xf32>
    %51 = arith.select %49, %43, %50 : vector<4x8x8xi1>, vector<4x8x8xf32>
    %cst_14 = arith.constant dense<0xFF800000> : vector<4x8xf32>
    %52 = vector.multi_reduction <maximumf>, %51, %cst_14 [2] : vector<4x8x8xf32> to vector<4x8xf32>
    %53 = vector.shape_cast %52 : vector<4x8xf32> to vector<4x8x1xf32>
    %54 = vector.broadcast %53 : vector<4x8x1xf32> to vector<4x8x8xf32>
    %55 = arith.subf %51, %54 : vector<4x8x8xf32>
    %56 = math.exp %55 : vector<4x8x8xf32>
    %cst_15 = arith.constant dense<0.000000e+00> : vector<4x8xf32>
    %57 = vector.multi_reduction <add>, %56, %cst_15 [2] : vector<4x8x8xf32> to vector<4x8xf32>
    %58 = vector.shape_cast %57 : vector<4x8xf32> to vector<4x8x1xf32>
    "tpu.trace_start"() <{level = 10 : i32, message = "hqk,hkd->hqd"}> : () -> ()
    %cst_16 = arith.constant dense<0.000000e+00> : vector<4x8x8xf32>
    %59 = tpu.matmul %56, %42, %cst_16 {dimension_numbers = #tpu.dot_dimension_numbers<[2], [1], [1], [2], [0, 0, 0, 1, 1, 2], [0], [0]>} : vector<4x8x8xf32>, vector<4x8x8xf32>, vector<4x8x8xf32> -> vector<4x8x8xf32>
    "tpu.trace_stop"() : () -> ()
    %60 = tpu.reciprocal %58 {approx = true} : vector<4x8x1xf32> -> vector<4x8x1xf32>
    %61 = vector.broadcast %60 : vector<4x8x1xf32> to vector<4x8x8xf32>
    %62 = arith.mulf %59, %61 : vector<4x8x8xf32>
    %63 = tpu.transpose %62, [1, 0, 2] : vector<4x8x8xf32> -> vector<8x4x8xf32>
    %64 = vector.shape_cast %63 : vector<8x4x8xf32> to vector<8x32xf32>
    %c0_17 = arith.constant 0 : index
    %c0_18 = arith.constant 0 : index
    %65 = vector.load %arg3[%c0_17, %c0_18] : memref<32x32xf32, #tpu.memory_space<vmem>>, vector<32x32xf32>
    %cst_19 = arith.constant dense<0.000000e+00> : vector<8x32xf32>
    %66 = tpu.matmul %64, %65, %cst_19 {dimension_numbers = #tpu.dot_dimension_numbers<[1], [0], [0], [1], [0, 0, 1, 1], [], []>} : vector<8x32xf32>, vector<32x32xf32>, vector<8x32xf32> -> vector<8x32xf32>
    %67 = vector.broadcast %7 : vector<1x32xf32> to vector<8x32xf32>
    %68 = arith.addf %66, %67 : vector<8x32xf32>
    %69 = arith.addf %1, %68 : vector<8x32xf32>
    %cst_20 = arith.constant dense<0.000000e+00> : vector<8xf32>
    %70 = vector.multi_reduction <add>, %69, %cst_20 [1] : vector<8x32xf32> to vector<8xf32>
    %71 = vector.shape_cast %70 : vector<8xf32> to vector<8x1xf32>
    %cst_21 = arith.constant 3.200000e+01 : f32
    %72 = vector.broadcast %cst_21 : f32 to vector<8x1xf32>
    %73 = arith.divf %71, %72 : vector<8x1xf32>
    %74 = vector.broadcast %73 : vector<8x1xf32> to vector<8x32xf32>
    %75 = arith.subf %69, %74 : vector<8x32xf32>
    %76 = arith.mulf %75, %75 : vector<8x32xf32>
    %cst_22 = arith.constant dense<0.000000e+00> : vector<8xf32>
    %77 = vector.multi_reduction <add>, %76, %cst_22 [1] : vector<8x32xf32> to vector<8xf32>
    %78 = vector.shape_cast %77 : vector<8xf32> to vector<8x1xf32>
    %cst_23 = arith.constant 3.200000e+01 : f32
    %79 = vector.broadcast %cst_23 : f32 to vector<8x1xf32>
    %80 = arith.divf %78, %79 : vector<8x1xf32>
    %cst_24 = arith.constant 9.99999974E-6 : f32
    %81 = vector.broadcast %cst_24 : f32 to vector<8x1xf32>
    %82 = arith.addf %80, %81 : vector<8x1xf32>
    %83 = math.rsqrt %82 : vector<8x1xf32>
    %84 = vector.broadcast %83 : vector<8x1xf32> to vector<8x32xf32>
    %85 = arith.mulf %75, %84 : vector<8x32xf32>
    %86 = vector.broadcast %5 : vector<1x32xf32> to vector<8x32xf32>
    %87 = arith.mulf %85, %86 : vector<8x32xf32>
    %88 = vector.broadcast %6 : vector<1x32xf32> to vector<8x32xf32>
    %89 = arith.addf %87, %88 : vector<8x32xf32>
    %c0_25 = arith.constant 0 : index
    %c0_26 = arith.constant 0 : index
    %90 = vector.load %arg4[%c0_25, %c0_26] : memref<32x128xf32, #tpu.memory_space<vmem>>, vector<32x128xf32>
    %cst_27 = arith.constant dense<0.000000e+00> : vector<8x128xf32>
    %91 = tpu.matmul %89, %90, %cst_27 {dimension_numbers = #tpu.dot_dimension_numbers<[1], [0], [0], [1], [0, 0, 1, 1], [], []>} : vector<8x32xf32>, vector<32x128xf32>, vector<8x128xf32> -> vector<8x128xf32>
    %92 = vector.broadcast %9 : vector<1x128xf32> to vector<8x128xf32>
    %93 = arith.addf %91, %92 : vector<8x128xf32>
    %cst_28 = arith.constant 0.000000e+00 : f32
    %94 = vector.broadcast %cst_28 : f32 to vector<8x128xf32>
    %95 = arith.maximumf %93, %94 : vector<8x128xf32>
    %c0_29 = arith.constant 0 : index
    %c0_30 = arith.constant 0 : index
    %96 = vector.load %arg5[%c0_29, %c0_30] : memref<128x32xf32, #tpu.memory_space<vmem>>, vector<128x32xf32>
    %cst_31 = arith.constant dense<0.000000e+00> : vector<8x32xf32>
    %97 = tpu.matmul %95, %96, %cst_31 {dimension_numbers = #tpu.dot_dimension_numbers<[1], [0], [0], [1], [0, 0, 1, 1], [], []>} : vector<8x128xf32>, vector<128x32xf32>, vector<8x32xf32> -> vector<8x32xf32>
    %98 = vector.broadcast %8 : vector<1x32xf32> to vector<8x32xf32>
    %99 = arith.addf %97, %98 : vector<8x32xf32>
    %100 = arith.addf %69, %99 : vector<8x32xf32>
    %c0_32 = arith.constant 0 : index
    %c0_33 = arith.constant 0 : index
    %c0_34 = arith.constant 0 : index
    %101 = vector.load %arg7[%c0_32, %c0_33, %c0_34] : memref<1x8x32xf32, #tpu.memory_space<vmem>>, vector<1x8x32xf32>
    %102 = vector.shape_cast %101 : vector<1x8x32xf32> to vector<8x32xf32>
    %103 = vector.shape_cast %100 : vector<8x32xf32> to vector<1x8x32xf32>
    tpu.vector_store %arg7[%c0_32, %c0_33, %c0_34], %103 {strides = array<i32>} : memref<1x8x32xf32, #tpu.memory_space<vmem>>, vector<1x8x32xf32>,
    return
  }
  func.func @transform_0(%arg0: i32) -> (i32, i32, i32) {
    %c0_i32 = arith.constant 0 : i32
    %c0_i32_0 = arith.constant 0 : i32
    %c0_i32_1 = arith.constant 0 : i32
    return %arg0, %c0_i32, %c0_i32_0 : i32, i32, i32
  }
  func.func @transform_1(%arg0: i32) -> (i32, i32) {
    %c0_i32 = arith.constant 0 : i32
    %c0_i32_0 = arith.constant 0 : i32
    %c0_i32_1 = arith.constant 0 : i32
    return %c0_i32, %c0_i32_0 : i32, i32
  }
  func.func @transform_2(%arg0: i32) -> (i32, i32) {
    %c0_i32 = arith.constant 0 : i32
    %c0_i32_0 = arith.constant 0 : i32
    %c0_i32_1 = arith.constant 0 : i32
    return %c0_i32, %c0_i32_0 : i32, i32
  }
  func.func @transform_3(%arg0: i32) -> (i32, i32) {
    %c0_i32 = arith.constant 0 : i32
    %c0_i32_0 = arith.constant 0 : i32
    %c0_i32_1 = arith.constant 0 : i32
    return %c0_i32, %c0_i32_0 : i32, i32
  }
  func.func @transform_4(%arg0: i32) -> (i32, i32) {
    %c0_i32 = arith.constant 0 : i32
    %c0_i32_0 = arith.constant 0 : i32
    %c0_i32_1 = arith.constant 0 : i32
    return %c0_i32, %c0_i32_0 : i32, i32
  }
  func.func @transform_5(%arg0: i32) -> (i32, i32) {
    %c0_i32 = arith.constant 0 : i32
    %c0_i32_0 = arith.constant 0 : i32
    %c0_i32_1 = arith.constant 0 : i32
    return %c0_i32, %c0_i32_0 : i32, i32
  }
  func.func @transform_6(%arg0: i32) -> (i32, i32, i32) {
    %c0_i32 = arith.constant 0 : i32
    %c0_i32_0 = arith.constant 0 : i32
    %c0_i32_1 = arith.constant 0 : i32
    return %arg0, %c0_i32, %c0_i32_0 : i32, i32, i32
  }
}

</mosaic_0001>

<llo_original>
// kernel: transformer_block.1
$region0: #{transformer_block.1}
  #allocation0 [shape = 'u32[]', space=smem, size = 0x4, offset = 0x4, fixed_abs, tag = 'smem constant byte address 0x4 - core index']
  #allocation1 [shape = 'u32[144,128]{1,0:T(1,128)}', space=vmem, size = 0x12000, scoped, tag = 'internal scratch']
  %s0 = inlined_call_operand.vmem [shape: f32[2,8,32], index: 0, kind: input, shape index: {}]
  %s1 = inlined_call_operand.vmem [shape: f32[32,96], index: 1, kind: input, shape index: {}]
  %s2 = inlined_call_operand.vmem [shape: f32[32,32], index: 2, kind: input, shape index: {}]
  %s3 = inlined_call_operand.vmem [shape: f32[32,128], index: 3, kind: input, shape index: {}]
  %s4 = inlined_call_operand.vmem [shape: f32[128,32], index: 4, kind: input, shape index: {}]
  %s5 = inlined_call_operand.vmem [shape: f32[8,128], index: 5, kind: input, shape index: {}]
  %s6 = inlined_call_operand.hbm [shape: f32[2,8,32], index: 6, kind: output, shape index: {}]
  %s7 = sld [smem:[#allocation0]]
  $region57: #{transformer_block.1} parent=0
    _
  %s9 = ssub.s32 1, %s7
  %s10 = scalar_select 0, %s9, %s7
  $region1: #{transformer_block.1} parent=0
    #allocation2 [shape = 'u8[8192]{0}', space=vmem, size = 0x2000, scoped, tag = 'output window, operand 0']
    #allocation3 [shape = 's32[2]{0}', space=sflag, size = 0x8, scoped, tag = 'scoped memory for transformer_block.1']
    %11 = vsyncpa [#allocation3], 0
    %s12 = scalar_lea.sflag [#allocation3], 1
    %13 = vsyncpa %s12, 0
    loop: start=0, step=1, limit=4
    $region2: #{transformer_block.1} parent=1 // loop_pre_header
      _
    $region3: #{transformer_block.1} parent=1 // loop_header
      %s15 = sphi 0, %s19
      %p16 = scmp.ge.s32.totalorder %s15, 4
      %s25 = sphi 0, %s27
      %s28 = sphi 0, %s25
      %s29 = sphi 0, %s28
      %s45 = sphi 0, %s29
      %s49 = sphi 0, %s49
      %s51 = sphi 0, %s49
      %s52 = sphi 0, %s51
      %s66 = sphi 0, %s52
      %s70 = sphi 0, %s70
      %s72 = sphi 0, %s70
      %s73 = sphi 0, %s72
      %s87 = sphi 0, %s73
      %s91 = sphi 0, %s91
      %s93 = sphi 0, %s91
      %s94 = sphi 0, %s93
      %s108 = sphi 0, %s94
      %s112 = sphi 0, %s112
      %s114 = sphi 0, %s112
      %s115 = sphi 0, %s114
      %s129 = sphi 0, %s115
      %s133 = sphi 0, %s133
      %s135 = sphi 0, %s133
      %s136 = sphi 0, %s135
      %s150 = sphi 0, %s136
      %s156 = sphi 0, %s158
      %s159 = sphi 0, %s156
      %s160 = sphi 0, %s159
      %s176 = sphi 0, %s160
    $region4: #{transformer_block.1} parent=1 // loop_header_branch
      %18 = sbr.rel (%p16) target = $region8
    $region5: #{transformer_block.1} parent=1 // loop_body
      %s20 = ssub.s32 %s15, 1
      %s21 = ssub.s32 %s15, 2
      %s22 = sadd.s32 %s15, 1
      %s23 = ssub.s32 %s15, %s22
      %p24 = scmp.eq.s32.totalorder %s23, 0
      %s26 = sadd.s32 %s25, 1
      %s27 = scalar_select %p24, %s25, %s26
      %p30 = pneg %p24
      %p31 = scmp.eq.s32.totalorder %s15, 1
      %p32 = por %p30, %p31
      %p33 = scmp.ne.s32.totalorder %s25, %s28
      %p34 = scmp.eq.s32.totalorder %s15, 0
      %p35 = por %p33, %p34
      %p36 = scmp.ne.s32.totalorder %s25, %s28
      %p37 = scmp.eq.s32.totalorder %s20, 1
      %p38 = por %p36, %p37
      %p39 = scmp.ne.s32.totalorder %s28, %s29
      %p40 = scmp.eq.s32.totalorder %s20, 0
      %p41 = por %p39, %p40
      %p42 = scmp.ne.s32.totalorder %s28, %s29
      %p43 = scmp.eq.s32.totalorder %s21, 1
      %p44 = por %p42, %p43
      %p46 = scmp.ne.s32.totalorder %s29, %s45
      %p47 = scmp.eq.s32.totalorder %s21, 0
      %p48 = por %p46, %p47
      %s50 = sadd.s32 %s49, 1
      %p53 = scmp.eq.s32.totalorder %s15, 1
      %p54 = scmp.ne.s32.totalorder %s49, %s51
      %p55 = scmp.eq.s32.totalorder %s15, 0
      %p56 = por %p54, %p55
      %p57 = scmp.ne.s32.totalorder %s49, %s51
      %p58 = scmp.eq.s32.totalorder %s20, 1
      %p59 = por %p57, %p58
      %p60 = scmp.ne.s32.totalorder %s51, %s52
      %p61 = scmp.eq.s32.totalorder %s20, 0
      %p62 = por %p60, %p61
      %p63 = scmp.ne.s32.totalorder %s51, %s52
      %p64 = scmp.eq.s32.totalorder %s21, 1
      %p65 = por %p63, %p64
      %p67 = scmp.ne.s32.totalorder %s52, %s66
      %p68 = scmp.eq.s32.totalorder %s21, 0
      %p69 = por %p67, %p68
      %s71 = sadd.s32 %s70, 1
      %p74 = scmp.eq.s32.totalorder %s15, 1
      %p75 = scmp.ne.s32.totalorder %s70, %s72
      %p76 = scmp.eq.s32.totalorder %s15, 0
      %p77 = por %p75, %p76
      %p78 = scmp.ne.s32.totalorder %s70, %s72
      %p79 = scmp.eq.s32.totalorder %s20, 1
      %p80 = por %p78, %p79
      %p81 = scmp.ne.s32.totalorder %s72, %s73
      %p82 = scmp.eq.s32.totalorder %s20, 0
      %p83 = por %p81, %p82
      %p84 = scmp.ne.s32.totalorder %s72, %s73
      %p85 = scmp.eq.s32.totalorder %s21, 1
      %p86 = por %p84, %p85
      %p88 = scmp.ne.s32.totalorder %s73, %s87
      %p89 = scmp.eq.s32.totalorder %s21, 0
      %p90 = por %p88, %p89
      %s92 = sadd.s32 %s91, 1
      %p95 = scmp.eq.s32.totalorder %s15, 1
      %p96 = scmp.ne.s32.totalorder %s91, %s93
      %p97 = scmp.eq.s32.totalorder %s15, 0
      %p98 = por %p96, %p97
      %p99 = scmp.ne.s32.totalorder %s91, %s93
      %p100 = scmp.eq.s32.totalorder %s20, 1
      %p101 = por %p99, %p100
      %p102 = scmp.ne.s32.totalorder %s93, %s94
      %p103 = scmp.eq.s32.totalorder %s20, 0
      %p104 = por %p102, %p103
      %p105 = scmp.ne.s32.totalorder %s93, %s94
      %p106 = scmp.eq.s32.totalorder %s21, 1
      %p107 = por %p105, %p106
      %p109 = scmp.ne.s32.totalorder %s94, %s108
      %p110 = scmp.eq.s32.totalorder %s21, 0
      %p111 = por %p109, %p110
      %s113 = sadd.s32 %s112, 1
      %p116 = scmp.eq.s32.totalorder %s15, 1
      %p117 = scmp.ne.s32.totalorder %s112, %s114
      %p118 = scmp.eq.s32.totalorder %s15, 0
      %p119 = por %p117, %p118
      %p120 = scmp.ne.s32.totalorder %s112, %s114
      %p121 = scmp.eq.s32.totalorder %s20, 1
      %p122 = por %p120, %p121
      %p123 = scmp.ne.s32.totalorder %s114, %s115
      %p124 = scmp.eq.s32.totalorder %s20, 0
      %p125 = por %p123, %p124
      %p126 = scmp.ne.s32.totalorder %s114, %s115
      %p127 = scmp.eq.s32.totalorder %s21, 1
      %p128 = por %p126, %p127
      %p130 = scmp.ne.s32.totalorder %s115, %s129
      %p131 = scmp.eq.s32.totalorder %s21, 0
      %p132 = por %p130, %p131
      %s134 = sadd.s32 %s133, 1
      %p137 = scmp.eq.s32.totalorder %s15, 1
      %p138 = scmp.ne.s32.totalorder %s133, %s135
      %p139 = scmp.eq.s32.totalorder %s15, 0
      %p140 = por %p138, %p139
      %p141 = scmp.ne.s32.totalorder %s133, %s135
      %p142 = scmp.eq.s32.totalorder %s20, 1
      %p143 = por %p141, %p142
      %p144 = scmp.ne.s32.totalorder %s135, %s136
      %p145 = scmp.eq.s32.totalorder %s20, 0
      %p146 = por %p144, %p145
      %p147 = scmp.ne.s32.totalorder %s135, %s136
      %p148 = scmp.eq.s32.totalorder %s21, 1
      %p149 = por %p147, %p148
      %p151 = scmp.ne.s32.totalorder %s136, %s150
      %p152 = scmp.eq.s32.totalorder %s21, 0
      %p153 = por %p151, %p152
      %s154 = ssub.s32 %s15, %s22
      %p155 = scmp.eq.s32.totalorder %s154, 0
      %s157 = sadd.s32 %s156, 1
      %s158 = scalar_select %p155, %s156, %s157
      %p161 = pneg %p155
      %p162 = scmp.eq.s32.totalorder %s15, 1
      %p163 = por %p161, %p162
      %p164 = scmp.ne.s32.totalorder %s156, %s159
      %p165 = scmp.eq.s32.totalorder %s15, 0
      %p166 = por %p164, %p165
      %p167 = scmp.ne.s32.totalorder %s156, %s159
      %p168 = scmp.eq.s32.totalorder %s20, 1
      %p169 = por %p167, %p168
      %p170 = scmp.ne.s32.totalorder %s159, %s160
      %p171 = scmp.eq.s32.totalorder %s20, 0
      %p172 = por %p170, %p171
      %p173 = scmp.ne.s32.totalorder %s159, %s160
      %p174 = scmp.eq.s32.totalorder %s21, 1
      %p175 = por %p173, %p174
      %p177 = scmp.ne.s32.totalorder %s160, %s176
      %p178 = scmp.eq.s32.totalorder %s21, 0
      %p179 = por %p177, %p178
      %p180 = scmp.le.s32.totalorder 1, %s15
      %p181 = scmp.lt.s32.totalorder %s15, 3
      %p182 = pnand %p180, %p181
      %p183 = pneg %p182
      // Predicated region
      $region9: #{transformer_block.1} parent=5 // pred_check
        _
      $region10: #{transformer_block.1} parent=5 // pred_check_branch
        %185 = sbr.rel (%p182) target = $region12
      $region11: #{transformer_block.1} parent=5 // pred_region
        %s186 = ssub.s32 %s15, 1
        // Predicated region
        $region13: #{transformer_block.1} parent=11 // pred_check
          %p187 = pneg %p62
        $region14: #{transformer_block.1} parent=11 // pred_check_branch
          %189 = sbr.rel (%p187) target = $region16
        $region15: #{transformer_block.1} parent=11 // pred_region
          _
        $region16: #{transformer_block.1} parent=11 // pred_fallthru
          _
        // Predicated region
        $region17: #{transformer_block.1} parent=11 // pred_check
          %p190 = pneg %p83
        $region18: #{transformer_block.1} parent=11 // pred_check_branch
          %192 = sbr.rel (%p190) target = $region20
        $region19: #{transformer_block.1} parent=11 // pred_region
          _
        $region20: #{transformer_block.1} parent=11 // pred_fallthru
          _
        // Predicated region
        $region21: #{transformer_block.1} parent=11 // pred_check
          %p193 = pneg %p104
        $region22: #{transformer_block.1} parent=11 // pred_check_branch
          %195 = sbr.rel (%p193) target = $region24
        $region23: #{transformer_block.1} parent=11 // pred_region
          _
        $region24: #{transformer_block.1} parent=11 // pred_fallthru
          _
        // Predicated region
        $region25: #{transformer_block.1} parent=11 // pred_check
          %p196 = pneg %p125
        $region26: #{transformer_block.1} parent=11 // pred_check_branch
          %198 = sbr.rel (%p196) target = $region28
        $region27: #{transformer_block.1} parent=11 // pred_region
          _
        $region28: #{transformer_block.1} parent=11 // pred_fallthru
          _
        // Predicated region
        $region29: #{transformer_block.1} parent=11 // pred_check
          %p199 = pneg %p146
        $region30: #{transformer_block.1} parent=11 // pred_check_branch
          %201 = sbr.rel (%p199) target = $region32
        $region31: #{transformer_block.1} parent=11 // pred_region
          _
        $region32: #{transformer_block.1} parent=11 // pred_fallthru
          _
      $region12: #{transformer_block.1} parent=5 // pred_fallthru
        _
      %p202 = scmp.lt.s32.totalorder %s15, 2
      // Predicated region
      $region33: #{transformer_block.1} parent=5 // pred_check
        %p203 = pneg %p202
      $region34: #{transformer_block.1} parent=5 // pred_check_branch
        %205 = sbr.rel (%p203) target = $region36
      $region35: #{transformer_block.1} parent=5 // pred_region
        // Predicated region
        $region37: #{transformer_block.1} parent=35 // pred_check
          %p206 = pneg %p35
        $region38: #{transformer_block.1} parent=35 // pred_check_branch
          %208 = sbr.rel (%p206) target = $region40
        $region39: #{transformer_block.1} parent=35 // pred_region
          %p209 = scmp.lt.s32.totalorder %s15, 1
          %s210 = scalar_select %p209, %s15, 1
          %s211 = smul.addr %s210, 8
          %s212 = scalar_lea.vmem %s0, %s211
        $region40: #{transformer_block.1} parent=35 // pred_fallthru
          _
      $region36: #{transformer_block.1} parent=5 // pred_fallthru
        _
      %p213 = scmp.le.s32.totalorder 1, %s15
      %p214 = scmp.lt.s32.totalorder %s15, 3
      %p215 = pnand %p213, %p214
      %p216 = pneg %p215
      // Predicated region
      $region41: #{transformer_block.1} parent=5 // pred_check
        _
      $region42: #{transformer_block.1} parent=5 // pred_check_branch
        %218 = sbr.rel (%p215) target = $region44
      $region43: #{transformer_block.1} parent=5 // pred_region
        %s219 = ssub.s32 %s15, 1
        %p220 = scmp.lt.s32.totalorder %s20, 1
        %s221 = scalar_select %p220, %s20, 1
        %s222 = smul.addr %s221, 8
        %s223 = scalar_lea.vmem %s0, %s222
        %p224 = pneg %p41
        %p225 = pneg %p38
        %p226 = pneg %p62
        %p227 = pneg %p59
        %p228 = pneg %p83
        %p229 = pneg %p80
        %p230 = pneg %p104
        %p231 = pneg %p101
        %p232 = pneg %p125
        %p233 = pneg %p122
        %p234 = pneg %p146
        %p235 = pneg %p143
        %p236 = pneg %p172
        %p237 = pneg %p169
        %s238 = sand.u32 %s159, 1
        %s239 = scalar_lea.sflag [#allocation3], %s238
        %s240 = sand.u32 %s159, 1
        %s241 = smul.addr %s240, 8
        %s242 = scalar_lea.vmem [#allocation2], %s241
        %p243 = scmp.lt.s32.totalorder %s20, 1
        %s244 = scalar_select %p243, %s20, 1
        %s245 = smul.addr %s244, 8
        %s246 = scalar_lea.vmem %s0, %s245
        %v247 = vld [vmem:[%s246] sm:$0xff]
        %v248 = vld [vmem:[%s5] sm:$0xff]
        %vm249 = vcmask 261120
        %v250 = vsel %vm249, %v247, 0.0
        %251 = vadd.xlane.f32.xlu0 %v250
        %v252 = vpop.xlane.xlu0 %251
        %v253 = vrcp.pop 32.0
        %v254 = vmul.f32 %v252, %v253
        %v255 = vsub.f32 %v247, %v254
        %v256 = vmul.f32 %v255, %v255
        %v257 = vsel %vm249, %v256, 0.0
        %258 = vadd.xlane.f32.xlu0 %v257
        %v259 = vpop.xlane.xlu0 %258
        %v260 = vmul.f32 %v259, %v253
        %v261 = vadd.f32 %v260, 1e-05
        %v262 = vrsqrt.pop %v261
        %v263 = vmul.f32 %v255, %v262
        %v264 = vlaneseq
        %v265 = vshrl.u32 %v264, 7
        %v266 = vsub.s32 0, %v265
        %v267 = vrot.slane %v248, %v266
        %v268 = vmul.f32 %v263, %v267
        %v269 = vlaneseq
        %v270 = vshrl.u32 %v269, 7
        %v271 = vsub.s32 1, %v270
        %v272 = vrot.slane %v248, %v271
        %v273 = vadd.f32 %v268, %v272
        %v274 = vld [vmem:[%s1] sm:$0xff]
        %v275 = vld [vmem:[%s1 + $0x8] sm:$0xff]
        %v276 = vld [vmem:[%s1 + $0x10] sm:$0xff]
        %v277 = vld [vmem:[%s1 + $0x18] sm:$0xff]
        %v279 = vsel %vm249, %v273, 0
        %281 = vmatprep.subr.mxu0 0.0
        %282 = vmatpush1.msra.mxu0 0.0
        %283 = vmatprep.subr.mxu0 0.0
        %284 = vmatpush1.msra.mxu0 0.0
        %285 = vmatprep.subr.mxu0 0.0
        %286 = vmatpush1.msra.mxu0 0.0
        %287 = vmatprep.subr.mxu0 0.0
        %288 = vmatpush1.msra.mxu0 0.0
        %289 = vmatprep.subr.mxu0 0.0
        %290 = vmatpush1.msra.mxu0 0.0
        %291 = vmatprep.subr.mxu0 0.0
        %292 = vmatpush1.msra.mxu0 0.0
        %293 = vmatprep.subr.mxu0 0.0
        %294 = vmatpush1.msra.mxu0 0.0
        %295 = vmatprep.subr.mxu0 0.0
        %296 = vmatpush1.msra.mxu0 0.0
        %297 = vmatprep.subr.mxu0 0.0
        %298 = vmatpush1.msra.mxu0 0.0
        %299 = vmatprep.subr.mxu0 0.0
        %300 = vmatpush1.msra.mxu0 0.0
        %301 = vmatprep.subr.mxu0 0.0
        %302 = vmatpush1.msra.mxu0 0.0
        %303 = vmatprep.subr.mxu0 0.0
        %304 = vmatpush1.msra.mxu0 0.0
        %305 = vmatprep.subr.mxu0 0.0
        %306 = vmatpush1.msra.mxu0 %v277
        %307 = vmatprep.subr.mxu0 0.0
        %308 = vmatpush1.msra.mxu0 %v276
        %309 = vmatprep.subr.mxu0 0.0
        %310 = vmatpush1.msra.mxu0 %v275
        %311 = vmatprep.subr.mxu0 0.0
        %312 = vmatpush1.msra.mxu0 %v274
        %313 = vmatprep.subr.mxu0 0.0
        %314 = vmatpush2.msra.mxu0 0.0
        %315 = vmatprep.subr.mxu0 0.0
        %316 = vmatpush2.msra.mxu0 0.0
        %317 = vmatprep.subr.mxu0 0.0
        %318 = vmatpush2.msra.mxu0 0.0
        %319 = vmatprep.subr.mxu0 0.0
        %320 = vmatpush2.msra.mxu0 0.0
        %321 = vmatprep.subr.mxu0 0.0
        %322 = vmatpush2.msra.mxu0 0.0
        %323 = vmatprep.subr.mxu0 0.0
        %324 = vmatpush2.msra.mxu0 0.0
        %325 = vmatprep.subr.mxu0 0.0
        %326 = vmatpush2.msra.mxu0 0.0
        %327 = vmatprep.subr.mxu0 0.0
        %328 = vmatpush2.msra.mxu0 0.0
        %329 = vmatprep.subr.mxu0 0.0
        %330 = vmatpush2.msra.mxu0 0.0
        %331 = vmatprep.subr.mxu0 0.0
        %332 = vmatpush2.msra.mxu0 0.0
        %333 = vmatprep.subr.mxu0 0.0
        %334 = vmatpush2.msra.mxu0 0.0
        %335 = vmatprep.subr.mxu0 0.0
        %336 = vmatpush2.msra.mxu0 0.0
        %337 = vmatprep.subr.mxu0 0.0
        %338 = vmatpush2.msra.mxu0 0.0
        %339 = vmatprep.subr.mxu0 0.0
        %340 = vmatpush2.msra.mxu0 0.0
        %341 = vmatprep.subr.mxu0 0.0
        %342 = vmatpush2.msra.mxu0 0.0
        %343 = vmatprep.subr.mxu0 0.0
        %344 = vmatpush2.msra.mxu0 0.0
        %345 = vmatprep.mubr.f32.mxu0 0.0
        %346 = vmatmul.mubr.f32.gmra.mxu0 %v279
        %v347 = vpop.f32.mrf.mxu0
        %v348 = vadd.f32 0.0, %v347
        %v349 = vpop.f32.mrf.mxu0
        %350 = vdwg.mxu0
        %v351 = vmul.f32 %v348, 0.17677669
        %353 = vrot.lane.b32.xlu0 %v351, 120
        %v354 = vpop.permute.xlu0 %353
        %356 = vrot.lane.b32.xlu0 %v351, 112
        %v357 = vpop.permute.xlu0 %356
        %359 = vrot.lane.b32.xlu0 %v351, 104
        %v360 = vpop.permute.xlu0 %359
        %v362 = vcombine.low %v351, %v357
        %v363 = vcombine.high %v351, %v357
        %v365 = vunpack.c.l.s4 1983009808
        %v366 = vunpack.c.0.s8 %v365
        %v367 = vlaneseq
        %v368 = vshrl.u32 %v367, 7
        %v369 = vsub.s32 %v366, %v368
        %v370 = vrot.slane %v362, %v369
        %v372 = vunpack.c.l.s4 1983009808
        %v373 = vunpack.c.0.s8 %v372
        %v374 = vlaneseq
        %v375 = vshrl.u32 %v374, 7
        %v376 = vsub.s32 %v373, %v375
        %v377 = vrot.slane %v363, %v376
        %v378 = vcombine.low %v354, %v360
        %v379 = vcombine.high %v354, %v360
        %v381 = vunpack.c.l.s4 1983009808
        %v382 = vunpack.c.0.s8 %v381
        %v383 = vlaneseq
        %v384 = vshrl.u32 %v383, 7
        %v385 = vsub.s32 %v382, %v384
        %v386 = vrot.slane %v378, %v385
        %v388 = vunpack.c.l.s4 1983009808
        %v389 = vunpack.c.0.s8 %v388
        %v390 = vlaneseq
        %v391 = vshrl.u32 %v390, 7
        %v392 = vsub.s32 %v389, %v391
        %v393 = vrot.slane %v379, %v392
        %v394 = vcombine.low %v370, %v386
        %v395 = vcombine.high %v370, %v386
        %v397 = vunpack.c.l.s4 1934713408
        %v398 = vunpack.c.0.s8 %v397
        %v399 = vlaneseq
        %v400 = vshrl.u32 %v399, 7
        %v401 = vsub.s32 %v398, %v400
        %v402 = vrot.slane %v394, %v401
        %v404 = vunpack.c.l.s4 1934713408
        %v405 = vunpack.c.0.s8 %v404
        %v406 = vlaneseq
        %v407 = vshrl.u32 %v406, 7
        %v408 = vsub.s32 %v405, %v407
        %v409 = vrot.slane %v395, %v408
        %v410 = vcombine.low %v377, %v393
        %v411 = vcombine.high %v377, %v393
        %v413 = vunpack.c.l.s4 1934713408
        %v414 = vunpack.c.0.s8 %v413
        %v415 = vlaneseq
        %v416 = vshrl.u32 %v415, 7
        %v417 = vsub.s32 %v414, %v416
        %v418 = vrot.slane %v410, %v417
        %v420 = vunpack.c.l.s4 1934713408
        %v421 = vunpack.c.0.s8 %v420
        %v422 = vlaneseq
        %v423 = vshrl.u32 %v422, 7
        %v424 = vsub.s32 %v421, %v423
        %v425 = vrot.slane %v411, %v424
        %v426 = vcombine.high %v402, 0.0
        %v427 = vcombine.high %v409, 0.0
        %v428 = vcombine.high %v418, 0.0
        %v429 = vcombine.high %v425, 0.0
        %v430 = vcombine.low %v402, %v409
        %v432 = vunpack.c.l.s4 1983009808
        %v433 = vunpack.c.0.s8 %v432
        %v434 = vlaneseq
        %v435 = vshrl.u32 %v434, 7
        %v436 = vsub.s32 %v433, %v435
        %v437 = vrot.slane %v430, %v436
        %v438 = vcombine.low %v426, %v427
        %v440 = vunpack.c.l.s4 1983009808
        %v441 = vunpack.c.0.s8 %v440
        %v442 = vlaneseq
        %v443 = vshrl.u32 %v442, 7
        %v444 = vsub.s32 %v441, %v443
        %v445 = vrot.slane %v438, %v444
        %v446 = vcombine.low %v418, %v425
        %v448 = vunpack.c.l.s4 1983009808
        %v449 = vunpack.c.0.s8 %v448
        %v450 = vlaneseq
        %v451 = vshrl.u32 %v450, 7
        %v452 = vsub.s32 %v449, %v451
        %v453 = vrot.slane %v446, %v452
        %v454 = vcombine.low %v428, %v429
        %v456 = vunpack.c.l.s4 1983009808
        %v457 = vunpack.c.0.s8 %v456
        %v458 = vlaneseq
        %v459 = vshrl.u32 %v458, 7
        %v460 = vsub.s32 %v457, %v459
        %v461 = vrot.slane %v454, %v460
        %v462 = vcombine.low %v437, %v445
        %v463 = vcombine.high %v437, %v445
        %v465 = vunpack.c.l.s4 1934713408
        %v466 = vunpack.c.0.s8 %v465
        %v467 = vlaneseq
        %v468 = vshrl.u32 %v467, 7
        %v469 = vsub.s32 %v466, %v468
        %v470 = vrot.slane %v462, %v469
        %v472 = vunpack.c.l.s4 1934713408
        %v473 = vunpack.c.0.s8 %v472
        %v474 = vlaneseq
        %v475 = vshrl.u32 %v474, 7
        %v476 = vsub.s32 %v473, %v475
        %v477 = vrot.slane %v463, %v476
        %v478 = vcombine.low %v453, %v461
        %v479 = vcombine.high %v453, %v461
        %v481 = vunpack.c.l.s4 1934713408
        %v482 = vunpack.c.0.s8 %v481
        %v483 = vlaneseq
        %v484 = vshrl.u32 %v483, 7
        %v485 = vsub.s32 %v482, %v484
        %v486 = vrot.slane %v478, %v485
        %v488 = vunpack.c.l.s4 1934713408
        %v489 = vunpack.c.0.s8 %v488
        %v490 = vlaneseq
        %v491 = vshrl.u32 %v490, 7
        %v492 = vsub.s32 %v489, %v491
        %v493 = vrot.slane %v479, %v492
        %v494 = vcombine.low %v470, %v486
        %v495 = vcombine.high %v470, %v486
        %v496 = vcombine.low %v477, %v493
        %v497 = vcombine.high %v477, %v493
        %499 = vrot.lane.b32.xlu0 %v348, 120
        %v500 = vpop.permute.xlu0 %499
        %501 = vrot.lane.b32.xlu0 %v348, 112
        %v502 = vpop.permute.xlu0 %501
        %503 = vrot.lane.b32.xlu0 %v348, 104
        %v504 = vpop.permute.xlu0 %503
        %505 = vrot.lane.b32.xlu0 %v348, 96
        %v506 = vpop.permute.xlu0 %505
        %507 = vrot.lane.b32.xlu0 %v500, 96
        %v508 = vpop.permute.xlu0 %507
        %509 = vrot.lane.b32.xlu0 %v502, 96
        %v510 = vpop.permute.xlu0 %509
        %511 = vrot.lane.b32.xlu0 %v504, 96
        %v512 = vpop.permute.xlu0 %511
        %v517 = vcombine.low %v506, %v510
        %v518 = vcombine.high %v506, %v510
        %v520 = vunpack.c.l.s4 1983009808
        %v521 = vunpack.c.0.s8 %v520
        %v522 = vlaneseq
        %v523 = vshrl.u32 %v522, 7
        %v524 = vsub.s32 %v521, %v523
        %v525 = vrot.slane %v517, %v524
        %v527 = vunpack.c.l.s4 1983009808
        %v528 = vunpack.c.0.s8 %v527
        %v529 = vlaneseq
        %v530 = vshrl.u32 %v529, 7
        %v531 = vsub.s32 %v528, %v530
        %v532 = vrot.slane %v518, %v531
        %v533 = vcombine.low %v508, %v512
        %v534 = vcombine.high %v508, %v512
        %v536 = vunpack.c.l.s4 1983009808
        %v537 = vunpack.c.0.s8 %v536
        %v538 = vlaneseq
        %v539 = vshrl.u32 %v538, 7
        %v540 = vsub.s32 %v537, %v539
        %v541 = vrot.slane %v533, %v540
        %v543 = vunpack.c.l.s4 1983009808
        %v544 = vunpack.c.0.s8 %v543
        %v545 = vlaneseq
        %v546 = vshrl.u32 %v545, 7
        %v547 = vsub.s32 %v544, %v546
        %v548 = vrot.slane %v534, %v547
        %v549 = vcombine.low %v525, %v541
        %v550 = vcombine.high %v525, %v541
        %v552 = vunpack.c.l.s4 1934713408
        %v553 = vunpack.c.0.s8 %v552
        %v554 = vlaneseq
        %v555 = vshrl.u32 %v554, 7
        %v556 = vsub.s32 %v553, %v555
        %v557 = vrot.slane %v549, %v556
        %v559 = vunpack.c.l.s4 1934713408
        %v560 = vunpack.c.0.s8 %v559
        %v561 = vlaneseq
        %v562 = vshrl.u32 %v561, 7
        %v563 = vsub.s32 %v560, %v562
        %v564 = vrot.slane %v550, %v563
        %v565 = vcombine.low %v532, %v548
        %v566 = vcombine.high %v532, %v548
        %v568 = vunpack.c.l.s4 1934713408
        %v569 = vunpack.c.0.s8 %v568
        %v570 = vlaneseq
        %v571 = vshrl.u32 %v570, 7
        %v572 = vsub.s32 %v569, %v571
        %v573 = vrot.slane %v565, %v572
        %v575 = vunpack.c.l.s4 1934713408
        %v576 = vunpack.c.0.s8 %v575
        %v577 = vlaneseq
        %v578 = vshrl.u32 %v577, 7
        %v579 = vsub.s32 %v576, %v578
        %v580 = vrot.slane %v566, %v579
        %v581 = vcombine.high %v557, 0.0
        %v582 = vcombine.high %v564, 0.0
        %v583 = vcombine.high %v573, 0.0
        %v584 = vcombine.high %v580, 0.0
        %v585 = vcombine.low %v557, %v564
        %v587 = vunpack.c.l.s4 1983009808
        %v588 = vunpack.c.0.s8 %v587
        %v589 = vlaneseq
        %v590 = vshrl.u32 %v589, 7
        %v591 = vsub.s32 %v588, %v590
        %v592 = vrot.slane %v585, %v591
        %v593 = vcombine.low %v581, %v582
        %v595 = vunpack.c.l.s4 1983009808
        %v596 = vunpack.c.0.s8 %v595
        %v597 = vlaneseq
        %v598 = vshrl.u32 %v597, 7
        %v599 = vsub.s32 %v596, %v598
        %v600 = vrot.slane %v593, %v599
        %v601 = vcombine.low %v573, %v580
        %v603 = vunpack.c.l.s4 1983009808
        %v604 = vunpack.c.0.s8 %v603
        %v605 = vlaneseq
        %v606 = vshrl.u32 %v605, 7
        %v607 = vsub.s32 %v604, %v606
        %v608 = vrot.slane %v601, %v607
        %v609 = vcombine.low %v583, %v584
        %v611 = vunpack.c.l.s4 1983009808
        %v612 = vunpack.c.0.s8 %v611
        %v613 = vlaneseq
        %v614 = vshrl.u32 %v613, 7
        %v615 = vsub.s32 %v612, %v614
        %v616 = vrot.slane %v609, %v615
        %v617 = vcombine.low %v592, %v600
        %v618 = vcombine.high %v592, %v600
        %v620 = vunpack.c.l.s4 1934713408
        %v621 = vunpack.c.0.s8 %v620
        %v622 = vlaneseq
        %v623 = vshrl.u32 %v622, 7
        %v624 = vsub.s32 %v621, %v623
        %v625 = vrot.slane %v617, %v624
        %v627 = vunpack.c.l.s4 1934713408
        %v628 = vunpack.c.0.s8 %v627
        %v629 = vlaneseq
        %v630 = vshrl.u32 %v629, 7
        %v631 = vsub.s32 %v628, %v630
        %v632 = vrot.slane %v618, %v631
        %v633 = vcombine.low %v608, %v616
        %v634 = vcombine.high %v608, %v616
        %v636 = vunpack.c.l.s4 1934713408
        %v637 = vunpack.c.0.s8 %v636
        %v638 = vlaneseq
        %v639 = vshrl.u32 %v638, 7
        %v640 = vsub.s32 %v637, %v639
        %v641 = vrot.slane %v633, %v640
        %v643 = vunpack.c.l.s4 1934713408
        %v644 = vunpack.c.0.s8 %v643
        %v645 = vlaneseq
        %v646 = vshrl.u32 %v645, 7
        %v647 = vsub.s32 %v644, %v646
        %v648 = vrot.slane %v634, %v647
        %v649 = vcombine.low %v625, %v641
        %v650 = vcombine.high %v625, %v641
        %v651 = vcombine.low %v632, %v648
        %v652 = vcombine.high %v632, %v648
        %653 = vrot.lane.b32.xlu0 %v348, 64
        %v654 = vpop.permute.xlu0 %653
        %655 = vrot.lane.b32.xlu0 %v500, 64
        %v656 = vpop.permute.xlu0 %655
        %657 = vrot.lane.b32.xlu0 %v502, 64
        %v658 = vpop.permute.xlu0 %657
        %659 = vrot.lane.b32.xlu0 %v504, 64
        %v660 = vpop.permute.xlu0 %659
        %v665 = vcombine.low %v654, %v658
        %v666 = vcombine.high %v654, %v658
        %v668 = vunpack.c.l.s4 1983009808
        %v669 = vunpack.c.0.s8 %v668
        %v670 = vlaneseq
        %v671 = vshrl.u32 %v670, 7
        %v672 = vsub.s32 %v669, %v671
        %v673 = vrot.slane %v665, %v672
        %v675 = vunpack.c.l.s4 1983009808
        %v676 = vunpack.c.0.s8 %v675
        %v677 = vlaneseq
        %v678 = vshrl.u32 %v677, 7
        %v679 = vsub.s32 %v676, %v678
        %v680 = vrot.slane %v666, %v679
        %v681 = vcombine.low %v656, %v660
        %v682 = vcombine.high %v656, %v660
        %v684 = vunpack.c.l.s4 1983009808
        %v685 = vunpack.c.0.s8 %v684
        %v686 = vlaneseq
        %v687 = vshrl.u32 %v686, 7
        %v688 = vsub.s32 %v685, %v687
        %v689 = vrot.slane %v681, %v688
        %v691 = vunpack.c.l.s4 1983009808
        %v692 = vunpack.c.0.s8 %v691
        %v693 = vlaneseq
        %v694 = vshrl.u32 %v693, 7
        %v695 = vsub.s32 %v692, %v694
        %v696 = vrot.slane %v682, %v695
        %v697 = vcombine.low %v673, %v689
        %v698 = vcombine.high %v673, %v689
        %v700 = vunpack.c.l.s4 1934713408
        %v701 = vunpack.c.0.s8 %v700
        %v702 = vlaneseq
        %v703 = vshrl.u32 %v702, 7
        %v704 = vsub.s32 %v701, %v703
        %v705 = vrot.slane %v697, %v704
        %v707 = vunpack.c.l.s4 1934713408
        %v708 = vunpack.c.0.s8 %v707
        %v709 = vlaneseq
        %v710 = vshrl.u32 %v709, 7
        %v711 = vsub.s32 %v708, %v710
        %v712 = vrot.slane %v698, %v711
        %v713 = vcombine.low %v680, %v696
        %v714 = vcombine.high %v680, %v696
        %v716 = vunpack.c.l.s4 1934713408
        %v717 = vunpack.c.0.s8 %v716
        %v718 = vlaneseq
        %v719 = vshrl.u32 %v718, 7
        %v720 = vsub.s32 %v717, %v719
        %v721 = vrot.slane %v713, %v720
        %v723 = vunpack.c.l.s4 1934713408
        %v724 = vunpack.c.0.s8 %v723
        %v725 = vlaneseq
        %v726 = vshrl.u32 %v725, 7
        %v727 = vsub.s32 %v724, %v726
        %v728 = vrot.slane %v714, %v727
        %v729 = vcombine.high %v705, 0.0
        %v730 = vcombine.high %v712, 0.0
        %v731 = vcombine.high %v721, 0.0
        %v732 = vcombine.high %v728, 0.0
        %v733 = vcombine.low %v705, %v712
        %v735 = vunpack.c.l.s4 1983009808
        %v736 = vunpack.c.0.s8 %v735
        %v737 = vlaneseq
        %v738 = vshrl.u32 %v737, 7
        %v739 = vsub.s32 %v736, %v738
        %v740 = vrot.slane %v733, %v739
        %v741 = vcombine.low %v729, %v730
        %v743 = vunpack.c.l.s4 1983009808
        %v744 = vunpack.c.0.s8 %v743
        %v745 = vlaneseq
        %v746 = vshrl.u32 %v745, 7
        %v747 = vsub.s32 %v744, %v746
        %v748 = vrot.slane %v741, %v747
        %v749 = vcombine.low %v721, %v728
        %v751 = vunpack.c.l.s4 1983009808
        %v752 = vunpack.c.0.s8 %v751
        %v753 = vlaneseq
        %v754 = vshrl.u32 %v753, 7
        %v755 = vsub.s32 %v752, %v754
        %v756 = vrot.slane %v749, %v755
        %v757 = vcombine.low %v731, %v732
        %v759 = vunpack.c.l.s4 1983009808
        %v760 = vunpack.c.0.s8 %v759
        %v761 = vlaneseq
        %v762 = vshrl.u32 %v761, 7
        %v763 = vsub.s32 %v760, %v762
        %v764 = vrot.slane %v757, %v763
        %v765 = vcombine.low %v740, %v748
        %v766 = vcombine.high %v740, %v748
        %v768 = vunpack.c.l.s4 1934713408
        %v769 = vunpack.c.0.s8 %v768
        %v770 = vlaneseq
        %v771 = vshrl.u32 %v770, 7
        %v772 = vsub.s32 %v769, %v771
        %v773 = vrot.slane %v765, %v772
        %v775 = vunpack.c.l.s4 1934713408
        %v776 = vunpack.c.0.s8 %v775
        %v777 = vlaneseq
        %v778 = vshrl.u32 %v777, 7
        %v779 = vsub.s32 %v776, %v778
        %v780 = vrot.slane %v766, %v779
        %v781 = vcombine.low %v756, %v764
        %v782 = vcombine.high %v756, %v764
        %v784 = vunpack.c.l.s4 1934713408
        %v785 = vunpack.c.0.s8 %v784
        %v786 = vlaneseq
        %v787 = vshrl.u32 %v786, 7
        %v788 = vsub.s32 %v785, %v787
        %v789 = vrot.slane %v781, %v788
        %v791 = vunpack.c.l.s4 1934713408
        %v792 = vunpack.c.0.s8 %v791
        %v793 = vlaneseq
        %v794 = vshrl.u32 %v793, 7
        %v795 = vsub.s32 %v792, %v794
        %v796 = vrot.slane %v782, %v795
        %v797 = vcombine.low %v773, %v789
        %v798 = vcombine.high %v773, %v789
        %v799 = vcombine.low %v780, %v796
        %v800 = vcombine.high %v780, %v796
        %vm801 = vcmask 64512
        %v803 = vsel %vm801, %v494, 0
        %v806 = vsel %vm801, %v649, 0
        %808 = vmatprep.subr.mxu0 0.0
        %809 = vmatpush1.xpose.msra.mxu0 0.0
        %810 = vmatprep.subr.mxu0 0.0
        %811 = vmatpush1.xpose.msra.mxu0 0.0
        %812 = vmatprep.subr.mxu0 0.0
        %813 = vmatpush1.xpose.msra.mxu0 0.0
        %814 = vmatprep.subr.mxu0 0.0
        %815 = vmatpush1.xpose.msra.mxu0 0.0
        %816 = vmatprep.subr.mxu0 0.0
        %817 = vmatpush1.xpose.msra.mxu0 0.0
        %818 = vmatprep.subr.mxu0 0.0
        %819 = vmatpush1.xpose.msra.mxu0 0.0
        %820 = vmatprep.subr.mxu0 0.0
        %821 = vmatpush1.xpose.msra.mxu0 0.0
        %822 = vmatprep.subr.mxu0 0.0
        %823 = vmatpush1.xpose.msra.mxu0 0.0
        %824 = vmatprep.subr.mxu0 0.0
        %825 = vmatpush1.xpose.msra.mxu0 0.0
        %826 = vmatprep.subr.mxu0 0.0
        %827 = vmatpush1.xpose.msra.mxu0 0.0
        %828 = vmatprep.subr.mxu0 0.0
        %829 = vmatpush1.xpose.msra.mxu0 0.0
        %830 = vmatprep.subr.mxu0 0.0
        %831 = vmatpush1.xpose.msra.mxu0 0.0
        %832 = vmatprep.subr.mxu0 0.0
        %833 = vmatpush1.xpose.msra.mxu0 0.0
        %834 = vmatprep.subr.mxu0 0.0
        %835 = vmatpush1.xpose.msra.mxu0 0.0
        %836 = vmatprep.subr.mxu0 0.0
        %837 = vmatpush1.xpose.msra.mxu0 0.0
        %838 = vmatprep.subr.mxu0 0.0
        %839 = vmatpush1.xpose.msra.mxu0 %v806
        %840 = vmatprep.subr.mxu0 0.0
        %841 = vmatpush2.xpose.msra.mxu0 0.0
        %842 = vmatprep.subr.mxu0 0.0
        %843 = vmatpush2.xpose.msra.mxu0 0.0
        %844 = vmatprep.subr.mxu0 0.0
        %845 = vmatpush2.xpose.msra.mxu0 0.0
        %846 = vmatprep.subr.mxu0 0.0
        %847 = vmatpush2.xpose.msra.mxu0 0.0
        %848 = vmatprep.subr.mxu0 0.0
        %849 = vmatpush2.xpose.msra.mxu0 0.0
        %850 = vmatprep.subr.mxu0 0.0
        %851 = vmatpush2.xpose.msra.mxu0 0.0
        %852 = vmatprep.subr.mxu0 0.0
        %853 = vmatpush2.xpose.msra.mxu0 0.0
        %854 = vmatprep.subr.mxu0 0.0
        %855 = vmatpush2.xpose.msra.mxu0 0.0
        %856 = vmatprep.subr.mxu0 0.0
        %857 = vmatpush2.xpose.msra.mxu0 0.0
        %858 = vmatprep.subr.mxu0 0.0
        %859 = vmatpush2.xpose.msra.mxu0 0.0
        %860 = vmatprep.subr.mxu0 0.0
        %861 = vmatpush2.xpose.msra.mxu0 0.0
        %862 = vmatprep.subr.mxu0 0.0
        %863 = vmatpush2.xpose.msra.mxu0 0.0
        %864 = vmatprep.subr.mxu0 0.0
        %865 = vmatpush2.xpose.msra.mxu0 0.0
        %866 = vmatprep.subr.mxu0 0.0
        %867 = vmatpush2.xpose.msra.mxu0 0.0
        %868 = vmatprep.subr.mxu0 0.0
        %869 = vmatpush2.xpose.msra.mxu0 0.0
        %870 = vmatprep.subr.mxu0 0.0
        %871 = vmatpush2.xpose.msra.mxu0 0.0
        %872 = vmatprep.mubr.f32.mxu0 0.0
        %873 = vmatmul.mubr.f32.gmra.mxu0 %v803
        %v874 = vpop.f32.mrf.mxu0
        %v875 = vadd.f32 0.0, %v874
        %v876 = vpop.f32.mrf.mxu0
        %877 = vdwg.mxu0
        %v879 = vsel %vm801, %v495, 0
        %v882 = vsel %vm801, %v650, 0
        %884 = vmatprep.subr.mxu0 0.0
        %885 = vmatpush1.xpose.msra.mxu0 0.0
        %886 = vmatprep.subr.mxu0 0.0
        %887 = vmatpush1.xpose.msra.mxu0 0.0
        %888 = vmatprep.subr.mxu0 0.0
        %889 = vmatpush1.xpose.msra.mxu0 0.0
        %890 = vmatprep.subr.mxu0 0.0
        %891 = vmatpush1.xpose.msra.mxu0 0.0
        %892 = vmatprep.subr.mxu0 0.0
        %893 = vmatpush1.xpose.msra.mxu0 0.0
        %894 = vmatprep.subr.mxu0 0.0
        %895 = vmatpush1.xpose.msra.mxu0 0.0
        %896 = vmatprep.subr.mxu0 0.0
        %897 = vmatpush1.xpose.msra.mxu0 0.0
        %898 = vmatprep.subr.mxu0 0.0
        %899 = vmatpush1.xpose.msra.mxu0 0.0
        %900 = vmatprep.subr.mxu0 0.0
        %901 = vmatpush1.xpose.msra.mxu0 0.0
        %902 = vmatprep.subr.mxu0 0.0
        %903 = vmatpush1.xpose.msra.mxu0 0.0
        %904 = vmatprep.subr.mxu0 0.0
        %905 = vmatpush1.xpose.msra.mxu0 0.0
        %906 = vmatprep.subr.mxu0 0.0
        %907 = vmatpush1.xpose.msra.mxu0 0.0
        %908 = vmatprep.subr.mxu0 0.0
        %909 = vmatpush1.xpose.msra.mxu0 0.0
        %910 = vmatprep.subr.mxu0 0.0
        %911 = vmatpush1.xpose.msra.mxu0 0.0
        %912 = vmatprep.subr.mxu0 0.0
        %913 = vmatpush1.xpose.msra.mxu0 0.0
        %914 = vmatprep.subr.mxu0 0.0
        %915 = vmatpush1.xpose.msra.mxu0 %v882
        %916 = vmatprep.subr.mxu0 0.0
        %917 = vmatpush2.xpose.msra.mxu0 0.0
        %918 = vmatprep.subr.mxu0 0.0
        %919 = vmatpush2.xpose.msra.mxu0 0.0
        %920 = vmatprep.subr.mxu0 0.0
        %921 = vmatpush2.xpose.msra.mxu0 0.0
        %922 = vmatprep.subr.mxu0 0.0
        %923 = vmatpush2.xpose.msra.mxu0 0.0
        %924 = vmatprep.subr.mxu0 0.0
        %925 = vmatpush2.xpose.msra.mxu0 0.0
        %926 = vmatprep.subr.mxu0 0.0
        %927 = vmatpush2.xpose.msra.mxu0 0.0
        %928 = vmatprep.subr.mxu0 0.0
        %929 = vmatpush2.xpose.msra.mxu0 0.0
        %930 = vmatprep.subr.mxu0 0.0
        %931 = vmatpush2.xpose.msra.mxu0 0.0
        %932 = vmatprep.subr.mxu0 0.0
        %933 = vmatpush2.xpose.msra.mxu0 0.0
        %934 = vmatprep.subr.mxu0 0.0
        %935 = vmatpush2.xpose.msra.mxu0 0.0
        %936 = vmatprep.subr.mxu0 0.0
        %937 = vmatpush2.xpose.msra.mxu0 0.0
        %938 = vmatprep.subr.mxu0 0.0
        %939 = vmatpush2.xpose.msra.mxu0 0.0
        %940 = vmatprep.subr.mxu0 0.0
        %941 = vmatpush2.xpose.msra.mxu0 0.0
        %942 = vmatprep.subr.mxu0 0.0
        %943 = vmatpush2.xpose.msra.mxu0 0.0
        %944 = vmatprep.subr.mxu0 0.0
        %945 = vmatpush2.xpose.msra.mxu0 0.0
        %946 = vmatprep.subr.mxu0 0.0
        %947 = vmatpush2.xpose.msra.mxu0 0.0
        %948 = vmatprep.mubr.f32.mxu0 0.0
        %949 = vmatmul.mubr.f32.gmra.mxu0 %v879
        %v950 = vpop.f32.mrf.mxu0
        %v951 = vadd.f32 0.0, %v950
        %v952 = vpop.f32.mrf.mxu0
        %953 = vdwg.mxu0
        %v955 = vsel %vm801, %v496, 0
        %v958 = vsel %vm801, %v651, 0
        %960 = vmatprep.subr.mxu0 0.0
        %961 = vmatpush1.xpose.msra.mxu0 0.0
        %962 = vmatprep.subr.mxu0 0.0
        %963 = vmatpush1.xpose.msra.mxu0 0.0
        %964 = vmatprep.subr.mxu0 0.0
        %965 = vmatpush1.xpose.msra.mxu0 0.0
        %966 = vmatprep.subr.mxu0 0.0
        %967 = vmatpush1.xpose.msra.mxu0 0.0
        %968 = vmatprep.subr.mxu0 0.0
        %969 = vmatpush1.xpose.msra.mxu0 0.0
        %970 = vmatprep.subr.mxu0 0.0
        %971 = vmatpush1.xpose.msra.mxu0 0.0
        %972 = vmatprep.subr.mxu0 0.0
        %973 = vmatpush1.xpose.msra.mxu0 0.0
        %974 = vmatprep.subr.mxu0 0.0
        %975 = vmatpush1.xpose.msra.mxu0 0.0
        %976 = vmatprep.subr.mxu0 0.0
        %977 = vmatpush1.xpose.msra.mxu0 0.0
        %978 = vmatprep.subr.mxu0 0.0
        %979 = vmatpush1.xpose.msra.mxu0 0.0
        %980 = vmatprep.subr.mxu0 0.0
        %981 = vmatpush1.xpose.msra.mxu0 0.0
        %982 = vmatprep.subr.mxu0 0.0
        %983 = vmatpush1.xpose.msra.mxu0 0.0
        %984 = vmatprep.subr.mxu0 0.0
        %985 = vmatpush1.xpose.msra.mxu0 0.0
        %986 = vmatprep.subr.mxu0 0.0
        %987 = vmatpush1.xpose.msra.mxu0 0.0
        %988 = vmatprep.subr.mxu0 0.0
        %989 = vmatpush1.xpose.msra.mxu0 0.0
        %990 = vmatprep.subr.mxu0 0.0
        %991 = vmatpush1.xpose.msra.mxu0 %v958
        %992 = vmatprep.subr.mxu0 0.0
        %993 = vmatpush2.xpose.msra.mxu0 0.0
        %994 = vmatprep.subr.mxu0 0.0
        %995 = vmatpush2.xpose.msra.mxu0 0.0
        %996 = vmatprep.subr.mxu0 0.0
        %997 = vmatpush2.xpose.msra.mxu0 0.0
        %998 = vmatprep.subr.mxu0 0.0
        %999 = vmatpush2.xpose.msra.mxu0 0.0
        %1000 = vmatprep.subr.mxu0 0.0
        %1001 = vmatpush2.xpose.msra.mxu0 0.0
        %1002 = vmatprep.subr.mxu0 0.0
        %1003 = vmatpush2.xpose.msra.mxu0 0.0
        %1004 = vmatprep.subr.mxu0 0.0
        %1005 = vmatpush2.xpose.msra.mxu0 0.0
        %1006 = vmatprep.subr.mxu0 0.0
        %1007 = vmatpush2.xpose.msra.mxu0 0.0
        %1008 = vmatprep.subr.mxu0 0.0
        %1009 = vmatpush2.xpose.msra.mxu0 0.0
        %1010 = vmatprep.subr.mxu0 0.0
        %1011 = vmatpush2.xpose.msra.mxu0 0.0
        %1012 = vmatprep.subr.mxu0 0.0
        %1013 = vmatpush2.xpose.msra.mxu0 0.0
        %1014 = vmatprep.subr.mxu0 0.0
        %1015 = vmatpush2.xpose.msra.mxu0 0.0
        %1016 = vmatprep.subr.mxu0 0.0
        %1017 = vmatpush2.xpose.msra.mxu0 0.0
        %1018 = vmatprep.subr.mxu0 0.0
        %1019 = vmatpush2.xpose.msra.mxu0 0.0
        %1020 = vmatprep.subr.mxu0 0.0
        %1021 = vmatpush2.xpose.msra.mxu0 0.0
        %1022 = vmatprep.subr.mxu0 0.0
        %1023 = vmatpush2.xpose.msra.mxu0 0.0
        %1024 = vmatprep.mubr.f32.mxu0 0.0
        %1025 = vmatmul.mubr.f32.gmra.mxu0 %v955
        %v1026 = vpop.f32.mrf.mxu0
        %v1027 = vadd.f32 0.0, %v1026
        %v1028 = vpop.f32.mrf.mxu0
        %1029 = vdwg.mxu0
        %v1031 = vsel %vm801, %v497, 0
        %v1034 = vsel %vm801, %v652, 0
        %1036 = vmatprep.subr.mxu0 0.0
        %1037 = vmatpush1.xpose.msra.mxu0 0.0
        %1038 = vmatprep.subr.mxu0 0.0
        %1039 = vmatpush1.xpose.msra.mxu0 0.0
        %1040 = vmatprep.subr.mxu0 0.0
        %1041 = vmatpush1.xpose.msra.mxu0 0.0
        %1042 = vmatprep.subr.mxu0 0.0
        %1043 = vmatpush1.xpose.msra.mxu0 0.0
        %1044 = vmatprep.subr.mxu0 0.0
        %1045 = vmatpush1.xpose.msra.mxu0 0.0
        %1046 = vmatprep.subr.mxu0 0.0
        %1047 = vmatpush1.xpose.msra.mxu0 0.0
        %1048 = vmatprep.subr.mxu0 0.0
        %1049 = vmatpush1.xpose.msra.mxu0 0.0
        %1050 = vmatprep.subr.mxu0 0.0
        %1051 = vmatpush1.xpose.msra.mxu0 0.0
        %1052 = vmatprep.subr.mxu0 0.0
        %1053 = vmatpush1.xpose.msra.mxu0 0.0
        %1054 = vmatprep.subr.mxu0 0.0
        %1055 = vmatpush1.xpose.msra.mxu0 0.0
        %1056 = vmatprep.subr.mxu0 0.0
        %1057 = vmatpush1.xpose.msra.mxu0 0.0
        %1058 = vmatprep.subr.mxu0 0.0
        %1059 = vmatpush1.xpose.msra.mxu0 0.0
        %1060 = vmatprep.subr.mxu0 0.0
        %1061 = vmatpush1.xpose.msra.mxu0 0.0
        %1062 = vmatprep.subr.mxu0 0.0
        %1063 = vmatpush1.xpose.msra.mxu0 0.0
        %1064 = vmatprep.subr.mxu0 0.0
        %1065 = vmatpush1.xpose.msra.mxu0 0.0
        %1066 = vmatprep.subr.mxu0 0.0
        %1067 = vmatpush1.xpose.msra.mxu0 %v1034
        %1068 = vmatprep.subr.mxu0 0.0
        %1069 = vmatpush2.xpose.msra.mxu0 0.0
        %1070 = vmatprep.subr.mxu0 0.0
        %1071 = vmatpush2.xpose.msra.mxu0 0.0
        %1072 = vmatprep.subr.mxu0 0.0
        %1073 = vmatpush2.xpose.msra.mxu0 0.0
        %1074 = vmatprep.subr.mxu0 0.0
        %1075 = vmatpush2.xpose.msra.mxu0 0.0
        %1076 = vmatprep.subr.mxu0 0.0
        %1077 = vmatpush2.xpose.msra.mxu0 0.0
        %1078 = vmatprep.subr.mxu0 0.0
        %1079 = vmatpush2.xpose.msra.mxu0 0.0
        %1080 = vmatprep.subr.mxu0 0.0
        %1081 = vmatpush2.xpose.msra.mxu0 0.0
        %1082 = vmatprep.subr.mxu0 0.0
        %1083 = vmatpush2.xpose.msra.mxu0 0.0
        %1084 = vmatprep.subr.mxu0 0.0
        %1085 = vmatpush2.xpose.msra.mxu0 0.0
        %1086 = vmatprep.subr.mxu0 0.0
        %1087 = vmatpush2.xpose.msra.mxu0 0.0
        %1088 = vmatprep.subr.mxu0 0.0
        %1089 = vmatpush2.xpose.msra.mxu0 0.0
        %1090 = vmatprep.subr.mxu0 0.0
        %1091 = vmatpush2.xpose.msra.mxu0 0.0
        %1092 = vmatprep.subr.mxu0 0.0
        %1093 = vmatpush2.xpose.msra.mxu0 0.0
        %1094 = vmatprep.subr.mxu0 0.0
        %1095 = vmatpush2.xpose.msra.mxu0 0.0
        %1096 = vmatprep.subr.mxu0 0.0
        %1097 = vmatpush2.xpose.msra.mxu0 0.0
        %1098 = vmatprep.subr.mxu0 0.0
        %1099 = vmatpush2.xpose.msra.mxu0 0.0
        %1100 = vmatprep.mubr.f32.mxu0 0.0
        %1101 = vmatmul.mubr.f32.gmra.mxu0 %v1031
        %v1102 = vpop.f32.mrf.mxu0
        %v1103 = vadd.f32 0.0, %v1102
        %v1104 = vpop.f32.mrf.mxu0
        %1105 = vdwg.mxu0
        %v1106 = vlaneseq
        %v1107 = vshrl.u32 %v1106, 7
        %v1108 = vlaneseq
        %v1109 = vand.u32 %v1108, 127
        %vm1110 = vcmp.le.s32.totalorder %v1109, %v1107
        %v1111 = vsel %vm1110, 1, 0
        %vm1112 = vcmp.eq.s32.totalorder %v1111, 1
        %v1113 = vsel %vm1112, %v875, -1e+09
        %v1114 = vsel %vm1112, %v951, -1e+09
        %v1115 = vsel %vm1112, %v1027, -1e+09
        %v1116 = vsel %vm1112, %v1103, -1e+09
        %v1117 = vsel %vm801, %v1113, -inf
        %1118 = vmax.xlane.f32.xlu0 %v1117
        %v1119 = vpop.xlane.xlu0 %1118
        %v1120 = vsel %vm801, %v1114, -inf
        %1121 = vmax.xlane.f32.xlu0 %v1120
        %v1122 = vpop.xlane.xlu0 %1121
        %v1123 = vsel %vm801, %v1115, -inf
        %1124 = vmax.xlane.f32.xlu0 %v1123
        %v1125 = vpop.xlane.xlu0 %1124
        %v1126 = vsel %vm801, %v1116, -inf
        %1127 = vmax.xlane.f32.xlu0 %v1126
        %v1128 = vpop.xlane.xlu0 %1127
        %v1129 = vsub.f32 %v1113, %v1119
        %v1130 = vsub.f32 %v1114, %v1122
        %v1131 = vsub.f32 %v1115, %v1125
        %v1132 = vsub.f32 %v1116, %v1128
        %v1133 = vmul.f32 %v1129, 1.442695
        %v1134 = vpow.pop %v1133
        %v1135 = vmul.f32 %v1130, 1.442695
        %v1136 = vpow.pop %v1135
        %v1137 = vmul.f32 %v1131, 1.442695
        %v1138 = vpow.pop %v1137
        %v1139 = vmul.f32 %v1132, 1.442695
        %v1140 = vpow.pop %v1139
        %v1141 = vsel %vm801, %v1134, 0.0
        %1142 = vadd.xlane.f32.xlu0 %v1141
        %v1143 = vpop.xlane.xlu0 %1142
        %v1144 = vsel %vm801, %v1136, 0.0
        %1145 = vadd.xlane.f32.xlu0 %v1144
        %v1146 = vpop.xlane.xlu0 %1145
        %v1147 = vsel %vm801, %v1138, 0.0
        %1148 = vadd.xlane.f32.xlu0 %v1147
        %v1149 = vpop.xlane.xlu0 %1148
        %v1150 = vsel %vm801, %v1140, 0.0
        %1151 = vadd.xlane.f32.xlu0 %v1150
        %v1152 = vpop.xlane.xlu0 %1151
        %v1154 = vsel %vm801, %v1134, 0
        %1156 = vmatprep.subr.mxu0 0.0
        %1157 = vmatpush1.msra.mxu0 0.0
        %1158 = vmatprep.subr.mxu0 0.0
        %1159 = vmatpush1.msra.mxu0 0.0
        %1160 = vmatprep.subr.mxu0 0.0
        %1161 = vmatpush1.msra.mxu0 0.0
        %1162 = vmatprep.subr.mxu0 0.0
        %1163 = vmatpush1.msra.mxu0 0.0
        %1164 = vmatprep.subr.mxu0 0.0
        %1165 = vmatpush1.msra.mxu0 0.0
        %1166 = vmatprep.subr.mxu0 0.0
        %1167 = vmatpush1.msra.mxu0 0.0
        %1168 = vmatprep.subr.mxu0 0.0
        %1169 = vmatpush1.msra.mxu0 0.0
        %1170 = vmatprep.subr.mxu0 0.0
        %1171 = vmatpush1.msra.mxu0 0.0
        %1172 = vmatprep.subr.mxu0 0.0
        %1173 = vmatpush1.msra.mxu0 0.0
        %1174 = vmatprep.subr.mxu0 0.0
        %1175 = vmatpush1.msra.mxu0 0.0
        %1176 = vmatprep.subr.mxu0 0.0
        %1177 = vmatpush1.msra.mxu0 0.0
        %1178 = vmatprep.subr.mxu0 0.0
        %1179 = vmatpush1.msra.mxu0 0.0
        %1180 = vmatprep.subr.mxu0 0.0
        %1181 = vmatpush1.msra.mxu0 0.0
        %1182 = vmatprep.subr.mxu0 0.0
        %1183 = vmatpush1.msra.mxu0 0.0
        %1184 = vmatprep.subr.mxu0 0.0
        %1185 = vmatpush1.msra.mxu0 0.0
        %1186 = vmatprep.subr.mxu0 0.0
        %1187 = vmatpush1.msra.mxu0 %v797
        %1188 = vmatprep.subr.mxu0 0.0
        %1189 = vmatpush2.msra.mxu0 0.0
        %1190 = vmatprep.subr.mxu0 0.0
        %1191 = vmatpush2.msra.mxu0 0.0
        %1192 = vmatprep.subr.mxu0 0.0
        %1193 = vmatpush2.msra.mxu0 0.0
        %1194 = vmatprep.subr.mxu0 0.0
        %1195 = vmatpush2.msra.mxu0 0.0
        %1196 = vmatprep.subr.mxu0 0.0
        %1197 = vmatpush2.msra.mxu0 0.0
        %1198 = vmatprep.subr.mxu0 0.0
        %1199 = vmatpush2.msra.mxu0 0.0
        %1200 = vmatprep.subr.mxu0 0.0
        %1201 = vmatpush2.msra.mxu0 0.0
        %1202 = vmatprep.subr.mxu0 0.0
        %1203 = vmatpush2.msra.mxu0 0.0
        %1204 = vmatprep.subr.mxu0 0.0
        %1205 = vmatpush2.msra.mxu0 0.0
        %1206 = vmatprep.subr.mxu0 0.0
        %1207 = vmatpush2.msra.mxu0 0.0
        %1208 = vmatprep.subr.mxu0 0.0
        %1209 = vmatpush2.msra.mxu0 0.0
        %1210 = vmatprep.subr.mxu0 0.0
        %1211 = vmatpush2.msra.mxu0 0.0
        %1212 = vmatprep.subr.mxu0 0.0
        %1213 = vmatpush2.msra.mxu0 0.0
        %1214 = vmatprep.subr.mxu0 0.0
        %1215 = vmatpush2.msra.mxu0 0.0
        %1216 = vmatprep.subr.mxu0 0.0
        %1217 = vmatpush2.msra.mxu0 0.0
        %1218 = vmatprep.subr.mxu0 0.0
        %1219 = vmatpush2.msra.mxu0 0.0
        %1220 = vmatprep.mubr.f32.mxu0 0.0
        %1221 = vmatmul.mubr.f32.gmra.mxu0 %v1154
        %v1222 = vpop.f32.mrf.mxu0
        %v1223 = vadd.f32 0.0, %v1222
        %v1224 = vpop.f32.mrf.mxu0
        %1225 = vdwg.mxu0
        %v1227 = vsel %vm801, %v1136, 0
        %1229 = vmatprep.subr.mxu0 0.0
        %1230 = vmatpush1.msra.mxu0 0.0
        %1231 = vmatprep.subr.mxu0 0.0
        %1232 = vmatpush1.msra.mxu0 0.0
        %1233 = vmatprep.subr.mxu0 0.0
        %1234 = vmatpush1.msra.mxu0 0.0
        %1235 = vmatprep.subr.mxu0 0.0
        %1236 = vmatpush1.msra.mxu0 0.0
        %1237 = vmatprep.subr.mxu0 0.0
        %1238 = vmatpush1.msra.mxu0 0.0
        %1239 = vmatprep.subr.mxu0 0.0
        %1240 = vmatpush1.msra.mxu0 0.0
        %1241 = vmatprep.subr.mxu0 0.0
        %1242 = vmatpush1.msra.mxu0 0.0
        %1243 = vmatprep.subr.mxu0 0.0
        %1244 = vmatpush1.msra.mxu0 0.0
        %1245 = vmatprep.subr.mxu0 0.0
        %1246 = vmatpush1.msra.mxu0 0.0
        %1247 = vmatprep.subr.mxu0 0.0
        %1248 = vmatpush1.msra.mxu0 0.0
        %1249 = vmatprep.subr.mxu0 0.0
        %1250 = vmatpush1.msra.mxu0 0.0
        %1251 = vmatprep.subr.mxu0 0.0
        %1252 = vmatpush1.msra.mxu0 0.0
        %1253 = vmatprep.subr.mxu0 0.0
        %1254 = vmatpush1.msra.mxu0 0.0
        %1255 = vmatprep.subr.mxu0 0.0
        %1256 = vmatpush1.msra.mxu0 0.0
        %1257 = vmatprep.subr.mxu0 0.0
        %1258 = vmatpush1.msra.mxu0 0.0
        %1259 = vmatprep.subr.mxu0 0.0
        %1260 = vmatpush1.msra.mxu0 %v798
        %1261 = vmatprep.subr.mxu0 0.0
        %1262 = vmatpush2.msra.mxu0 0.0
        %1263 = vmatprep.subr.mxu0 0.0
        %1264 = vmatpush2.msra.mxu0 0.0
        %1265 = vmatprep.subr.mxu0 0.0
        %1266 = vmatpush2.msra.mxu0 0.0
        %1267 = vmatprep.subr.mxu0 0.0
        %1268 = vmatpush2.msra.mxu0 0.0
        %1269 = vmatprep.subr.mxu0 0.0
        %1270 = vmatpush2.msra.mxu0 0.0
        %1271 = vmatprep.subr.mxu0 0.0
        %1272 = vmatpush2.msra.mxu0 0.0
        %1273 = vmatprep.subr.mxu0 0.0
        %1274 = vmatpush2.msra.mxu0 0.0
        %1275 = vmatprep.subr.mxu0 0.0
        %1276 = vmatpush2.msra.mxu0 0.0
        %1277 = vmatprep.subr.mxu0 0.0
        %1278 = vmatpush2.msra.mxu0 0.0
        %1279 = vmatprep.subr.mxu0 0.0
        %1280 = vmatpush2.msra.mxu0 0.0
        %1281 = vmatprep.subr.mxu0 0.0
        %1282 = vmatpush2.msra.mxu0 0.0
        %1283 = vmatprep.subr.mxu0 0.0
        %1284 = vmatpush2.msra.mxu0 0.0
        %1285 = vmatprep.subr.mxu0 0.0
        %1286 = vmatpush2.msra.mxu0 0.0
        %1287 = vmatprep.subr.mxu0 0.0
        %1288 = vmatpush2.msra.mxu0 0.0
        %1289 = vmatprep.subr.mxu0 0.0
        %1290 = vmatpush2.msra.mxu0 0.0
        %1291 = vmatprep.subr.mxu0 0.0
        %1292 = vmatpush2.msra.mxu0 0.0
        %1293 = vmatprep.mubr.f32.mxu0 0.0
        %1294 = vmatmul.mubr.f32.gmra.mxu0 %v1227
        %v1295 = vpop.f32.mrf.mxu0
        %v1296 = vadd.f32 0.0, %v1295
        %v1297 = vpop.f32.mrf.mxu0
        %1298 = vdwg.mxu0
        %v1300 = vsel %vm801, %v1138, 0
        %1302 = vmatprep.subr.mxu0 0.0
        %1303 = vmatpush1.msra.mxu0 0.0
        %1304 = vmatprep.subr.mxu0 0.0
        %1305 = vmatpush1.msra.mxu0 0.0
        %1306 = vmatprep.subr.mxu0 0.0
        %1307 = vmatpush1.msra.mxu0 0.0
        %1308 = vmatprep.subr.mxu0 0.0
        %1309 = vmatpush1.msra.mxu0 0.0
        %1310 = vmatprep.subr.mxu0 0.0
        %1311 = vmatpush1.msra.mxu0 0.0
        %1312 = vmatprep.subr.mxu0 0.0
        %1313 = vmatpush1.msra.mxu0 0.0
        %1314 = vmatprep.subr.mxu0 0.0
        %1315 = vmatpush1.msra.mxu0 0.0
        %1316 = vmatprep.subr.mxu0 0.0
        %1317 = vmatpush1.msra.mxu0 0.0
        %1318 = vmatprep.subr.mxu0 0.0
        %1319 = vmatpush1.msra.mxu0 0.0
        %1320 = vmatprep.subr.mxu0 0.0
        %1321 = vmatpush1.msra.mxu0 0.0
        %1322 = vmatprep.subr.mxu0 0.0
        %1323 = vmatpush1.msra.mxu0 0.0
        %1324 = vmatprep.subr.mxu0 0.0
        %1325 = vmatpush1.msra.mxu0 0.0
        %1326 = vmatprep.subr.mxu0 0.0
        %1327 = vmatpush1.msra.mxu0 0.0
        %1328 = vmatprep.subr.mxu0 0.0
        %1329 = vmatpush1.msra.mxu0 0.0
        %1330 = vmatprep.subr.mxu0 0.0
        %1331 = vmatpush1.msra.mxu0 0.0
        %1332 = vmatprep.subr.mxu0 0.0
        %1333 = vmatpush1.msra.mxu0 %v799
        %1334 = vmatprep.subr.mxu0 0.0
        %1335 = vmatpush2.msra.mxu0 0.0
        %1336 = vmatprep.subr.mxu0 0.0
        %1337 = vmatpush2.msra.mxu0 0.0
        %1338 = vmatprep.subr.mxu0 0.0
        %1339 = vmatpush2.msra.mxu0 0.0
        %1340 = vmatprep.subr.mxu0 0.0
        %1341 = vmatpush2.msra.mxu0 0.0
        %1342 = vmatprep.subr.mxu0 0.0
        %1343 = vmatpush2.msra.mxu0 0.0
        %1344 = vmatprep.subr.mxu0 0.0
        %1345 = vmatpush2.msra.mxu0 0.0
        %1346 = vmatprep.subr.mxu0 0.0
        %1347 = vmatpush2.msra.mxu0 0.0
        %1348 = vmatprep.subr.mxu0 0.0
        %1349 = vmatpush2.msra.mxu0 0.0
        %1350 = vmatprep.subr.mxu0 0.0
        %1351 = vmatpush2.msra.mxu0 0.0
        %1352 = vmatprep.subr.mxu0 0.0
        %1353 = vmatpush2.msra.mxu0 0.0
        %1354 = vmatprep.subr.mxu0 0.0
        %1355 = vmatpush2.msra.mxu0 0.0
        %1356 = vmatprep.subr.mxu0 0.0
        %1357 = vmatpush2.msra.mxu0 0.0
        %1358 = vmatprep.subr.mxu0 0.0
        %1359 = vmatpush2.msra.mxu0 0.0
        %1360 = vmatprep.subr.mxu0 0.0
        %1361 = vmatpush2.msra.mxu0 0.0
        %1362 = vmatprep.subr.mxu0 0.0
        %1363 = vmatpush2.msra.mxu0 0.0
        %1364 = vmatprep.subr.mxu0 0.0
        %1365 = vmatpush2.msra.mxu0 0.0
        %1366 = vmatprep.mubr.f32.mxu0 0.0
        %1367 = vmatmul.mubr.f32.gmra.mxu0 %v1300
        %v1368 = vpop.f32.mrf.mxu0
        %v1369 = vadd.f32 0.0, %v1368
        %v1370 = vpop.f32.mrf.mxu0
        %1371 = vdwg.mxu0
        %v1373 = vsel %vm801, %v1140, 0
        %1375 = vmatprep.subr.mxu0 0.0
        %1376 = vmatpush1.msra.mxu0 0.0
        %1377 = vmatprep.subr.mxu0 0.0
        %1378 = vmatpush1.msra.mxu0 0.0
        %1379 = vmatprep.subr.mxu0 0.0
        %1380 = vmatpush1.msra.mxu0 0.0
        %1381 = vmatprep.subr.mxu0 0.0
        %1382 = vmatpush1.msra.mxu0 0.0
        %1383 = vmatprep.subr.mxu0 0.0
        %1384 = vmatpush1.msra.mxu0 0.0
        %1385 = vmatprep.subr.mxu0 0.0
        %1386 = vmatpush1.msra.mxu0 0.0
        %1387 = vmatprep.subr.mxu0 0.0
        %1388 = vmatpush1.msra.mxu0 0.0
        %1389 = vmatprep.subr.mxu0 0.0
        %1390 = vmatpush1.msra.mxu0 0.0
        %1391 = vmatprep.subr.mxu0 0.0
        %1392 = vmatpush1.msra.mxu0 0.0
        %1393 = vmatprep.subr.mxu0 0.0
        %1394 = vmatpush1.msra.mxu0 0.0
        %1395 = vmatprep.subr.mxu0 0.0
        %1396 = vmatpush1.msra.mxu0 0.0
        %1397 = vmatprep.subr.mxu0 0.0
        %1398 = vmatpush1.msra.mxu0 0.0
        %1399 = vmatprep.subr.mxu0 0.0
        %1400 = vmatpush1.msra.mxu0 0.0
        %1401 = vmatprep.subr.mxu0 0.0
        %1402 = vmatpush1.msra.mxu0 0.0
        %1403 = vmatprep.subr.mxu0 0.0
        %1404 = vmatpush1.msra.mxu0 0.0
        %1405 = vmatprep.subr.mxu0 0.0
        %1406 = vmatpush1.msra.mxu0 %v800
        %1407 = vmatprep.subr.mxu0 0.0
        %1408 = vmatpush2.msra.mxu0 0.0
        %1409 = vmatprep.subr.mxu0 0.0
        %1410 = vmatpush2.msra.mxu0 0.0
        %1411 = vmatprep.subr.mxu0 0.0
        %1412 = vmatpush2.msra.mxu0 0.0
        %1413 = vmatprep.subr.mxu0 0.0
        %1414 = vmatpush2.msra.mxu0 0.0
        %1415 = vmatprep.subr.mxu0 0.0
        %1416 = vmatpush2.msra.mxu0 0.0
        %1417 = vmatprep.subr.mxu0 0.0
        %1418 = vmatpush2.msra.mxu0 0.0
        %1419 = vmatprep.subr.mxu0 0.0
        %1420 = vmatpush2.msra.mxu0 0.0
        %1421 = vmatprep.subr.mxu0 0.0
        %1422 = vmatpush2.msra.mxu0 0.0
        %1423 = vmatprep.subr.mxu0 0.0
        %1424 = vmatpush2.msra.mxu0 0.0
        %1425 = vmatprep.subr.mxu0 0.0
        %1426 = vmatpush2.msra.mxu0 0.0
        %1427 = vmatprep.subr.mxu0 0.0
        %1428 = vmatpush2.msra.mxu0 0.0
        %1429 = vmatprep.subr.mxu0 0.0
        %1430 = vmatpush2.msra.mxu0 0.0
        %1431 = vmatprep.subr.mxu0 0.0
        %1432 = vmatpush2.msra.mxu0 0.0
        %1433 = vmatprep.subr.mxu0 0.0
        %1434 = vmatpush2.msra.mxu0 0.0
        %1435 = vmatprep.subr.mxu0 0.0
        %1436 = vmatpush2.msra.mxu0 0.0
        %1437 = vmatprep.subr.mxu0 0.0
        %1438 = vmatpush2.msra.mxu0 0.0
        %1439 = vmatprep.mubr.f32.mxu0 0.0
        %1440 = vmatmul.mubr.f32.gmra.mxu0 %v1373
        %v1441 = vpop.f32.mrf.mxu0
        %v1442 = vadd.f32 0.0, %v1441
        %v1443 = vpop.f32.mrf.mxu0
        %1444 = vdwg.mxu0
        %v1445 = vrcp.pop %v1143
        %v1446 = vrcp.pop %v1146
        %v1447 = vrcp.pop %v1149
        %v1448 = vrcp.pop %v1152
        %v1449 = vmul.f32 %v1223, %v1445
        %v1450 = vmul.f32 %v1296, %v1446
        %v1451 = vmul.f32 %v1369, %v1447
        %v1452 = vmul.f32 %v1442, %v1448
        %v1453 = vcombine.low %v1449, %v1451
        %v1454 = vcombine.high %v1449, %v1451
        %v1456 = vunpack.c.l.s4 1983009808
        %v1457 = vunpack.c.0.s8 %v1456
        %v1458 = vlaneseq
        %v1459 = vshrl.u32 %v1458, 7
        %v1460 = vsub.s32 %v1457, %v1459
        %v1461 = vrot.slane %v1453, %v1460
        %v1463 = vunpack.c.l.s4 1983009808
        %v1464 = vunpack.c.0.s8 %v1463
        %v1465 = vlaneseq
        %v1466 = vshrl.u32 %v1465, 7
        %v1467 = vsub.s32 %v1464, %v1466
        %v1468 = vrot.slane %v1454, %v1467
        %v1469 = vcombine.low %v1450, %v1452
        %v1470 = vcombine.high %v1450, %v1452
        %v1472 = vunpack.c.l.s4 1983009808
        %v1473 = vunpack.c.0.s8 %v1472
        %v1474 = vlaneseq
        %v1475 = vshrl.u32 %v1474, 7
        %v1476 = vsub.s32 %v1473, %v1475
        %v1477 = vrot.slane %v1469, %v1476
        %v1479 = vunpack.c.l.s4 1983009808
        %v1480 = vunpack.c.0.s8 %v1479
        %v1481 = vlaneseq
        %v1482 = vshrl.u32 %v1481, 7
        %v1483 = vsub.s32 %v1480, %v1482
        %v1484 = vrot.slane %v1470, %v1483
        %v1485 = vcombine.low %v1461, %v1477
        %v1486 = vcombine.high %v1461, %v1477
        %v1488 = vunpack.c.l.s4 1934713408
        %v1489 = vunpack.c.0.s8 %v1488
        %v1490 = vlaneseq
        %v1491 = vshrl.u32 %v1490, 7
        %v1492 = vsub.s32 %v1489, %v1491
        %v1493 = vrot.slane %v1485, %v1492
        %v1495 = vunpack.c.l.s4 1934713408
        %v1496 = vunpack.c.0.s8 %v1495
        %v1497 = vlaneseq
        %v1498 = vshrl.u32 %v1497, 7
        %v1499 = vsub.s32 %v1496, %v1498
        %v1500 = vrot.slane %v1486, %v1499
        %v1501 = vcombine.low %v1468, %v1484
        %v1502 = vcombine.high %v1468, %v1484
        %v1504 = vunpack.c.l.s4 1934713408
        %v1505 = vunpack.c.0.s8 %v1504
        %v1506 = vlaneseq
        %v1507 = vshrl.u32 %v1506, 7
        %v1508 = vsub.s32 %v1505, %v1507
        %v1509 = vrot.slane %v1501, %v1508
        %v1511 = vunpack.c.l.s4 1934713408
        %v1512 = vunpack.c.0.s8 %v1511
        %v1513 = vlaneseq
        %v1514 = vshrl.u32 %v1513, 7
        %v1515 = vsub.s32 %v1512, %v1514
        %v1516 = vrot.slane %v1502, %v1515
        %v1517 = vcombine.high %v1493, 0.0
        %v1518 = vcombine.high %v1500, 0.0
        %v1519 = vcombine.high %v1509, 0.0
        %v1520 = vcombine.high %v1516, 0.0
        %v1521 = vcombine.low %v1493, %v1500
        %v1523 = vunpack.c.l.s4 1983009808
        %v1524 = vunpack.c.0.s8 %v1523
        %v1525 = vlaneseq
        %v1526 = vshrl.u32 %v1525, 7
        %v1527 = vsub.s32 %v1524, %v1526
        %v1528 = vrot.slane %v1521, %v1527
        %v1529 = vcombine.low %v1517, %v1518
        %v1531 = vunpack.c.l.s4 1983009808
        %v1532 = vunpack.c.0.s8 %v1531
        %v1533 = vlaneseq
        %v1534 = vshrl.u32 %v1533, 7
        %v1535 = vsub.s32 %v1532, %v1534
        %v1536 = vrot.slane %v1529, %v1535
        %v1537 = vcombine.low %v1509, %v1516
        %v1539 = vunpack.c.l.s4 1983009808
        %v1540 = vunpack.c.0.s8 %v1539
        %v1541 = vlaneseq
        %v1542 = vshrl.u32 %v1541, 7
        %v1543 = vsub.s32 %v1540, %v1542
        %v1544 = vrot.slane %v1537, %v1543
        %v1545 = vcombine.low %v1519, %v1520
        %v1547 = vunpack.c.l.s4 1983009808
        %v1548 = vunpack.c.0.s8 %v1547
        %v1549 = vlaneseq
        %v1550 = vshrl.u32 %v1549, 7
        %v1551 = vsub.s32 %v1548, %v1550
        %v1552 = vrot.slane %v1545, %v1551
        %v1553 = vcombine.low %v1528, %v1536
        %v1554 = vcombine.high %v1528, %v1536
        %v1556 = vunpack.c.l.s4 1934713408
        %v1557 = vunpack.c.0.s8 %v1556
        %v1558 = vlaneseq
        %v1559 = vshrl.u32 %v1558, 7
        %v1560 = vsub.s32 %v1557, %v1559
        %v1561 = vrot.slane %v1553, %v1560
        %v1563 = vunpack.c.l.s4 1934713408
        %v1564 = vunpack.c.0.s8 %v1563
        %v1565 = vlaneseq
        %v1566 = vshrl.u32 %v1565, 7
        %v1567 = vsub.s32 %v1564, %v1566
        %v1568 = vrot.slane %v1554, %v1567
        %v1569 = vcombine.low %v1544, %v1552
        %v1570 = vcombine.high %v1544, %v1552
        %v1572 = vunpack.c.l.s4 1934713408
        %v1573 = vunpack.c.0.s8 %v1572
        %v1574 = vlaneseq
        %v1575 = vshrl.u32 %v1574, 7
        %v1576 = vsub.s32 %v1573, %v1575
        %v1577 = vrot.slane %v1569, %v1576
        %v1579 = vunpack.c.l.s4 1934713408
        %v1580 = vunpack.c.0.s8 %v1579
        %v1581 = vlaneseq
        %v1582 = vshrl.u32 %v1581, 7
        %v1583 = vsub.s32 %v1580, %v1582
        %v1584 = vrot.slane %v1570, %v1583
        %v1585 = vcombine.low %v1561, %v1577
        %v1586 = vcombine.high %v1561, %v1577
        %v1587 = vcombine.low %v1568, %v1584
        %v1588 = vcombine.high %v1568, %v1584
        %1590 = vrot.lane.b32.xlu0 %v1586, 8
        %v1591 = vpop.permute.xlu0 %1590
        %1594 = vrot.lane.b32.xlu0 %v1587, 16
        %v1595 = vpop.permute.xlu0 %1594
        %1598 = vrot.lane.b32.xlu0 %v1588, 24
        %v1599 = vpop.permute.xlu0 %1598
        %v1601 = vsel %vm801, %v1585, %v1591
        %vm1602 = vcmask 130048
        %v1603 = vsel %vm1602, %v1601, %v1595
        %vm1604 = vcmask 195584
        %v1605 = vsel %vm1604, %v1603, %v1599
        %v1606 = vld [vmem:[%s2] sm:$0xff]
        %v1607 = vld [vmem:[%s2 + $0x8] sm:$0xff]
        %v1608 = vld [vmem:[%s2 + $0x10] sm:$0xff]
        %v1609 = vld [vmem:[%s2 + $0x18] sm:$0xff]
        %v1610 = vlaneseq
        %v1611 = vshrl.u32 %v1610, 7
        %v1612 = vsub.s32 4, %v1611
        %v1613 = vrot.slane %v248, %v1612
        %v1615 = vsel %vm249, %v1605, 0
        %1617 = vmatprep.subr.mxu0 0.0
        %1618 = vmatpush1.msra.mxu0 0.0
        %1619 = vmatprep.subr.mxu0 0.0
        %1620 = vmatpush1.msra.mxu0 0.0
        %1621 = vmatprep.subr.mxu0 0.0
        %1622 = vmatpush1.msra.mxu0 0.0
        %1623 = vmatprep.subr.mxu0 0.0
        %1624 = vmatpush1.msra.mxu0 0.0
        %1625 = vmatprep.subr.mxu0 0.0
        %1626 = vmatpush1.msra.mxu0 0.0
        %1627 = vmatprep.subr.mxu0 0.0
        %1628 = vmatpush1.msra.mxu0 0.0
        %1629 = vmatprep.subr.mxu0 0.0
        %1630 = vmatpush1.msra.mxu0 0.0
        %1631 = vmatprep.subr.mxu0 0.0
        %1632 = vmatpush1.msra.mxu0 0.0
        %1633 = vmatprep.subr.mxu0 0.0
        %1634 = vmatpush1.msra.mxu0 0.0
        %1635 = vmatprep.subr.mxu0 0.0
        %1636 = vmatpush1.msra.mxu0 0.0
        %1637 = vmatprep.subr.mxu0 0.0
        %1638 = vmatpush1.msra.mxu0 0.0
        %1639 = vmatprep.subr.mxu0 0.0
        %1640 = vmatpush1.msra.mxu0 0.0
        %1641 = vmatprep.subr.mxu0 0.0
        %1642 = vmatpush1.msra.mxu0 %v1609
        %1643 = vmatprep.subr.mxu0 0.0
        %1644 = vmatpush1.msra.mxu0 %v1608
        %1645 = vmatprep.subr.mxu0 0.0
        %1646 = vmatpush1.msra.mxu0 %v1607
        %1647 = vmatprep.subr.mxu0 0.0
        %1648 = vmatpush1.msra.mxu0 %v1606
        %1649 = vmatprep.subr.mxu0 0.0
        %1650 = vmatpush2.msra.mxu0 0.0
        %1651 = vmatprep.subr.mxu0 0.0
        %1652 = vmatpush2.msra.mxu0 0.0
        %1653 = vmatprep.subr.mxu0 0.0
        %1654 = vmatpush2.msra.mxu0 0.0
        %1655 = vmatprep.subr.mxu0 0.0
        %1656 = vmatpush2.msra.mxu0 0.0
        %1657 = vmatprep.subr.mxu0 0.0
        %1658 = vmatpush2.msra.mxu0 0.0
        %1659 = vmatprep.subr.mxu0 0.0
        %1660 = vmatpush2.msra.mxu0 0.0
        %1661 = vmatprep.subr.mxu0 0.0
        %1662 = vmatpush2.msra.mxu0 0.0
        %1663 = vmatprep.subr.mxu0 0.0
        %1664 = vmatpush2.msra.mxu0 0.0
        %1665 = vmatprep.subr.mxu0 0.0
        %1666 = vmatpush2.msra.mxu0 0.0
        %1667 = vmatprep.subr.mxu0 0.0
        %1668 = vmatpush2.msra.mxu0 0.0
        %1669 = vmatprep.subr.mxu0 0.0
        %1670 = vmatpush2.msra.mxu0 0.0
        %1671 = vmatprep.subr.mxu0 0.0
        %1672 = vmatpush2.msra.mxu0 0.0
        %1673 = vmatprep.subr.mxu0 0.0
        %1674 = vmatpush2.msra.mxu0 0.0
        %1675 = vmatprep.subr.mxu0 0.0
        %1676 = vmatpush2.msra.mxu0 0.0
        %1677 = vmatprep.subr.mxu0 0.0
        %1678 = vmatpush2.msra.mxu0 0.0
        %1679 = vmatprep.subr.mxu0 0.0
        %1680 = vmatpush2.msra.mxu0 0.0
        %1681 = vmatprep.mubr.f32.mxu0 0.0
        %1682 = vmatmul.mubr.f32.gmra.mxu0 %v1615
        %v1683 = vpop.f32.mrf.mxu0
        %v1684 = vadd.f32 %v1613, %v1683
        %v1685 = vpop.f32.mrf.mxu0
        %1686 = vdwg.mxu0
        %v1687 = vadd.f32 %v247, %v1684
        %v1688 = vsel %vm249, %v1687, 0.0
        %1689 = vadd.xlane.f32.xlu0 %v1688
        %v1690 = vpop.xlane.xlu0 %1689
        %v1691 = vmul.f32 %v1690, %v253
        %v1692 = vsub.f32 %v1687, %v1691
        %v1693 = vmul.f32 %v1692, %v1692
        %v1694 = vsel %vm249, %v1693, 0.0
        %1695 = vadd.xlane.f32.xlu0 %v1694
        %v1696 = vpop.xlane.xlu0 %1695
        %v1697 = vmul.f32 %v1696, %v253
        %v1698 = vadd.f32 %v1697, 1e-05
        %v1699 = vrsqrt.pop %v1698
        %v1700 = vmul.f32 %v1692, %v1699
        %v1701 = vlaneseq
        %v1702 = vshrl.u32 %v1701, 7
        %v1703 = vsub.s32 2, %v1702
        %v1704 = vrot.slane %v248, %v1703
        %v1705 = vmul.f32 %v1700, %v1704
        %v1706 = vlaneseq
        %v1707 = vshrl.u32 %v1706, 7
        %v1708 = vsub.s32 3, %v1707
        %v1709 = vrot.slane %v248, %v1708
        %v1710 = vadd.f32 %v1705, %v1709
        %v1711 = vld [vmem:[%s3] sm:$0xff]
        %v1712 = vld [vmem:[%s3 + $0x8] sm:$0xff]
        %v1713 = vld [vmem:[%s3 + $0x10] sm:$0xff]
        %v1714 = vld [vmem:[%s3 + $0x18] sm:$0xff]
        %v1715 = vlaneseq
        %v1716 = vshrl.u32 %v1715, 7
        %v1717 = vsub.s32 6, %v1716
        %v1718 = vrot.slane %v248, %v1717
        %v1720 = vsel %vm249, %v1710, 0
        %1722 = vmatprep.subr.mxu0 0.0
        %1723 = vmatpush1.msra.mxu0 0.0
        %1724 = vmatprep.subr.mxu0 0.0
        %1725 = vmatpush1.msra.mxu0 0.0
        %1726 = vmatprep.subr.mxu0 0.0
        %1727 = vmatpush1.msra.mxu0 0.0
        %1728 = vmatprep.subr.mxu0 0.0
        %1729 = vmatpush1.msra.mxu0 0.0
        %1730 = vmatprep.subr.mxu0 0.0
        %1731 = vmatpush1.msra.mxu0 0.0
        %1732 = vmatprep.subr.mxu0 0.0
        %1733 = vmatpush1.msra.mxu0 0.0
        %1734 = vmatprep.subr.mxu0 0.0
        %1735 = vmatpush1.msra.mxu0 0.0
        %1736 = vmatprep.subr.mxu0 0.0
        %1737 = vmatpush1.msra.mxu0 0.0
        %1738 = vmatprep.subr.mxu0 0.0
        %1739 = vmatpush1.msra.mxu0 0.0
        %1740 = vmatprep.subr.mxu0 0.0
        %1741 = vmatpush1.msra.mxu0 0.0
        %1742 = vmatprep.subr.mxu0 0.0
        %1743 = vmatpush1.msra.mxu0 0.0
        %1744 = vmatprep.subr.mxu0 0.0
        %1745 = vmatpush1.msra.mxu0 0.0
        %1746 = vmatprep.subr.mxu0 0.0
        %1747 = vmatpush1.msra.mxu0 %v1714
        %1748 = vmatprep.subr.mxu0 0.0
        %1749 = vmatpush1.msra.mxu0 %v1713
        %1750 = vmatprep.subr.mxu0 0.0
        %1751 = vmatpush1.msra.mxu0 %v1712
        %1752 = vmatprep.subr.mxu0 0.0
        %1753 = vmatpush1.msra.mxu0 %v1711
        %1754 = vmatprep.subr.mxu0 0.0
        %1755 = vmatpush2.msra.mxu0 0.0
        %1756 = vmatprep.subr.mxu0 0.0
        %1757 = vmatpush2.msra.mxu0 0.0
        %1758 = vmatprep.subr.mxu0 0.0
        %1759 = vmatpush2.msra.mxu0 0.0
        %1760 = vmatprep.subr.mxu0 0.0
        %1761 = vmatpush2.msra.mxu0 0.0
        %1762 = vmatprep.subr.mxu0 0.0
        %1763 = vmatpush2.msra.mxu0 0.0
        %1764 = vmatprep.subr.mxu0 0.0
        %1765 = vmatpush2.msra.mxu0 0.0
        %1766 = vmatprep.subr.mxu0 0.0
        %1767 = vmatpush2.msra.mxu0 0.0
        %1768 = vmatprep.subr.mxu0 0.0
        %1769 = vmatpush2.msra.mxu0 0.0
        %1770 = vmatprep.subr.mxu0 0.0
        %1771 = vmatpush2.msra.mxu0 0.0
        %1772 = vmatprep.subr.mxu0 0.0
        %1773 = vmatpush2.msra.mxu0 0.0
        %1774 = vmatprep.subr.mxu0 0.0
        %1775 = vmatpush2.msra.mxu0 0.0
        %1776 = vmatprep.subr.mxu0 0.0
        %1777 = vmatpush2.msra.mxu0 0.0
        %1778 = vmatprep.subr.mxu0 0.0
        %1779 = vmatpush2.msra.mxu0 0.0
        %1780 = vmatprep.subr.mxu0 0.0
        %1781 = vmatpush2.msra.mxu0 0.0
        %1782 = vmatprep.subr.mxu0 0.0
        %1783 = vmatpush2.msra.mxu0 0.0
        %1784 = vmatprep.subr.mxu0 0.0
        %1785 = vmatpush2.msra.mxu0 0.0
        %1786 = vmatprep.mubr.f32.mxu0 0.0
        %1787 = vmatmul.mubr.f32.gmra.mxu0 %v1720
        %v1788 = vpop.f32.mrf.mxu0
        %v1789 = vadd.f32 %v1718, %v1788
        %v1790 = vpop.f32.mrf.mxu0
        %1791 = vdwg.mxu0
        %v1792 = vmax.f32 %v1789, 0.0
        %v1793 = vld [vmem:[%s4] sm:$0xff]
        %v1794 = vld [vmem:[%s4 + $0x8] sm:$0xff]
        %v1795 = vld [vmem:[%s4 + $0x10] sm:$0xff]
        %v1796 = vld [vmem:[%s4 + $0x18] sm:$0xff]
        %v1797 = vld [vmem:[%s4 + $0x20] sm:$0xff]
        %v1798 = vld [vmem:[%s4 + $0x28] sm:$0xff]
        %v1799 = vld [vmem:[%s4 + $0x30] sm:$0xff]
        %v1800 = vld [vmem:[%s4 + $0x38] sm:$0xff]
        %v1801 = vld [vmem:[%s4 + $0x40] sm:$0xff]
        %v1802 = vld [vmem:[%s4 + $0x48] sm:$0xff]
        %v1803 = vld [vmem:[%s4 + $0x50] sm:$0xff]
        %v1804 = vld [vmem:[%s4 + $0x58] sm:$0xff]
        %v1805 = vld [vmem:[%s4 + $0x60] sm:$0xff]
        %v1806 = vld [vmem:[%s4 + $0x68] sm:$0xff]
        %v1807 = vld [vmem:[%s4 + $0x70] sm:$0xff]
        %v1808 = vld [vmem:[%s4 + $0x78] sm:$0xff]
        %v1809 = vlaneseq
        %v1810 = vshrl.u32 %v1809, 7
        %v1811 = vsub.s32 5, %v1810
        %v1812 = vrot.slane %v248, %v1811
        %1813 = vmatprep.subr.mxu0 0.0
        %1814 = vmatpush1.msra.mxu0 %v1808
        %1815 = vmatprep.subr.mxu0 0.0
        %1816 = vmatpush1.msra.mxu0 %v1807
        %1817 = vmatprep.subr.mxu0 0.0
        %1818 = vmatpush1.msra.mxu0 %v1806
        %1819 = vmatprep.subr.mxu0 0.0
        %1820 = vmatpush1.msra.mxu0 %v1805
        %1821 = vmatprep.subr.mxu0 0.0
        %1822 = vmatpush1.msra.mxu0 %v1804
        %1823 = vmatprep.subr.mxu0 0.0
        %1824 = vmatpush1.msra.mxu0 %v1803
        %1825 = vmatprep.subr.mxu0 0.0
        %1826 = vmatpush1.msra.mxu0 %v1802
        %1827 = vmatprep.subr.mxu0 0.0
        %1828 = vmatpush1.msra.mxu0 %v1801
        %1829 = vmatprep.subr.mxu0 0.0
        %1830 = vmatpush1.msra.mxu0 %v1800
        %1831 = vmatprep.subr.mxu0 0.0
        %1832 = vmatpush1.msra.mxu0 %v1799
        %1833 = vmatprep.subr.mxu0 0.0
        %1834 = vmatpush1.msra.mxu0 %v1798
        %1835 = vmatprep.subr.mxu0 0.0
        %1836 = vmatpush1.msra.mxu0 %v1797
        %1837 = vmatprep.subr.mxu0 0.0
        %1838 = vmatpush1.msra.mxu0 %v1796
        %1839 = vmatprep.subr.mxu0 0.0
        %1840 = vmatpush1.msra.mxu0 %v1795
        %1841 = vmatprep.subr.mxu0 0.0
        %1842 = vmatpush1.msra.mxu0 %v1794
        %1843 = vmatprep.subr.mxu0 0.0
        %1844 = vmatpush1.msra.mxu0 %v1793
        %1845 = vmatprep.subr.mxu0 0.0
        %1846 = vmatpush2.msra.mxu0 0.0
        %1847 = vmatprep.subr.mxu0 0.0
        %1848 = vmatpush2.msra.mxu0 0.0
        %1849 = vmatprep.subr.mxu0 0.0
        %1850 = vmatpush2.msra.mxu0 0.0
        %1851 = vmatprep.subr.mxu0 0.0
        %1852 = vmatpush2.msra.mxu0 0.0
        %1853 = vmatprep.subr.mxu0 0.0
        %1854 = vmatpush2.msra.mxu0 0.0
        %1855 = vmatprep.subr.mxu0 0.0
        %1856 = vmatpush2.msra.mxu0 0.0
        %1857 = vmatprep.subr.mxu0 0.0
        %1858 = vmatpush2.msra.mxu0 0.0
        %1859 = vmatprep.subr.mxu0 0.0
        %1860 = vmatpush2.msra.mxu0 0.0
        %1861 = vmatprep.subr.mxu0 0.0
        %1862 = vmatpush2.msra.mxu0 0.0
        %1863 = vmatprep.subr.mxu0 0.0
        %1864 = vmatpush2.msra.mxu0 0.0
        %1865 = vmatprep.subr.mxu0 0.0
        %1866 = vmatpush2.msra.mxu0 0.0
        %1867 = vmatprep.subr.mxu0 0.0
        %1868 = vmatpush2.msra.mxu0 0.0
        %1869 = vmatprep.subr.mxu0 0.0
        %1870 = vmatpush2.msra.mxu0 0.0
        %1871 = vmatprep.subr.mxu0 0.0
        %1872 = vmatpush2.msra.mxu0 0.0
        %1873 = vmatprep.subr.mxu0 0.0
        %1874 = vmatpush2.msra.mxu0 0.0
        %1875 = vmatprep.subr.mxu0 0.0
        %1876 = vmatpush2.msra.mxu0 0.0
        %1877 = vmatprep.mubr.f32.mxu0 0.0
        %1878 = vmatmul.mubr.f32.gmra.mxu0 %v1792
        %v1879 = vpop.f32.mrf.mxu0
        %v1880 = vadd.f32 %v1812, %v1879
        %v1881 = vpop.f32.mrf.mxu0
        %1882 = vdwg.mxu0
        %v1883 = vadd.f32 %v1687, %v1880
        %1884 = vst.msk [vmem:[%s242] sm:$0xff] %vm249, %v1883
        %s1885 = sand.u32 %s159, 1
        %s1886 = scalar_lea.sflag [#allocation3], %s1885
        %s1887 = sand.u32 %s159, 1
        %s1888 = smul.addr %s1887, 8
        %s1889 = scalar_lea.vmem [#allocation2], %s1888
        // Predicated region
        $region45: #{transformer_block.1} parent=43 // pred_check
          %p1890 = pneg %p169
        $region46: #{transformer_block.1} parent=43 // pred_check_branch
          %1892 = sbr.rel (%p1890) target = $region48
        $region47: #{transformer_block.1} parent=43 // pred_region
          %s1894 = ssub.s32 128, 128
          %1895 = vsyncadd %s1886, %s1894
          %s1896 = smul.addr %s20, 128
          %s1897 = scalar_lea.hbm %s6, %s1896
          %s1899 = sshll.u32 %s1889, 4
          %s1900 = int_to_ptr.vmem [resolvable:$true] %s1899
          %1902 = dma.vmem_to_hbm [thread:$0]  %s1900, 128, %s1897, %s1886
        $region48: #{transformer_block.1} parent=43 // pred_fallthru
          _
      $region44: #{transformer_block.1} parent=5 // pred_fallthru
        _
      %p1903 = scmp.le.s32.totalorder 2, %s15
      // Predicated region
      $region49: #{transformer_block.1} parent=5 // pred_check
        %p1904 = pneg %p1903
      $region50: #{transformer_block.1} parent=5 // pred_check_branch
        %1906 = sbr.rel (%p1904) target = $region52
      $region51: #{transformer_block.1} parent=5 // pred_region
        %s1907 = ssub.s32 %s15, 2
        // Predicated region
        $region53: #{transformer_block.1} parent=51 // pred_check
          %p1908 = pneg %p175
        $region54: #{transformer_block.1} parent=51 // pred_check_branch
          %1910 = sbr.rel (%p1908) target = $region56
        $region55: #{transformer_block.1} parent=51 // pred_region
          %s1911 = sand.u32 %s160, 1
          %s1912 = scalar_lea.sflag [#allocation3], %s1911
          %s1913 = sand.u32 %s160, 1
          %s1914 = smul.addr %s1913, 8
          %s1915 = scalar_lea.vmem [#allocation2], %s1914
          %1916 = dma.done %s1912, 128
        $region56: #{transformer_block.1} parent=51 // pred_fallthru
          _
      $region52: #{transformer_block.1} parent=5 // pred_fallthru
        _
    $region6: #{transformer_block.1} parent=1 // loop_footer
      %s19 = sadd.s32 1, %s15
    $region7: #{transformer_block.1} parent=1 // loop_footer_branch
      %14 = sbr.rel target = $region3
    $region8: #{transformer_block.1} parent=1 // loop_exit
      _
    %1917 = vsyncpa [#allocation3], 1
    %s1918 = scalar_lea.sflag [#allocation3], 1
    %1919 = vsyncpa %s1918, 1

</llo_original>
